<compile_context>
chip_gen: v5e
topology: v5e:2x2
jax: 0.10.0
libtpu: 0.0.40
codegen_flags: <defaults>
</compile_context>

<pallas_src>
import functools

import jax
import jax.numpy as jnp
from jax.experimental import pallas as pl
from jax.experimental.pallas import tpu as pltpu


def _round_up(x, m):
    return ((x + m - 1) // m) * m


# --------------------- Kernel A: per-node scores (node tiles) ----------------
def _node_scores_kernel(emb_ref, w2t_ref, bias_ref, out_ref):
    """out (2, TM) = w2t (2, D) contracted with emb (TM, D) over D, + bias (2, 1).

    Row 0 = emb @ w[:D] + b  (bias folded here once), row 1 = emb @ w[D:].
    Output lanes run along the node dimension -> lane-dense unmasked stores.
    """
    out_ref[...] = jax.lax.dot_general(
        w2t_ref[...], emb_ref[...],
        dimension_numbers=(((1,), (1,)), ((), ())),   # contract D with D (B^T)
        preferred_element_type=jnp.float32,
    ) + bias_ref[...]


# ----------------- Kernel B: per-edge gather + add (edge tiles) --------------
def _edge_gather_kernel(src_ref, dst_ref, scores_ref, out_ref):
    """out[0, e] = scores[0, src[e]] + scores[1, dst[e]] for one edge tile.

    src_ref, dst_ref : (1, TE) int32    -- lane-major edge endpoints
    scores_ref       : (2, Npad) f32    -- per-node scores (resident per view)
    out_ref          : (1, TE) f32      -- lane-dense edge logits
    """
    n_pad = scores_ref.shape[1]
    # (N,1) iota column broadcast-compared against the (1,TE) index rows:
    # no materialized (2N,TE) iota, two separate (N,TE) one-hots.
    node_ids = jax.lax.broadcasted_iota(jnp.int32, (n_pad, 1), 0)     # (N, 1)
    onehot_src = (node_ids == src_ref[...]).astype(jnp.float32)       # (N, TE)
    onehot_dst = (node_ids == dst_ref[...]).astype(jnp.float32)       # (N, TE)
    # Out-of-range indices would silently gather 0 (no fault) -- indices are
    # assumed to be valid node ids, as in the PyTorch module.
    s = scores_ref[...]                                               # (2, N)
    out_ref[...] = (
        jnp.dot(s[0:1, :], onehot_src, preferred_element_type=jnp.float32)
        + jnp.dot(s[1:2, :], onehot_dst, preferred_element_type=jnp.float32)
    )
    # TODO(synk): for very large N the one-hot build becomes VALU/VMEM-bound;
    # switch to a resident-table gather (jnp.take / pl.Element row DMA) there.


@functools.partial(jax.jit, static_argnames=("tile_edges", "node_tile"))
def edge_logits_pallas(embeds, src, dst, weight_t, bias, *,
                       tile_edges=1024, node_tile=512):
    """embeds: (V, N, D) f32; src/dst: (V, E) int; weight_t: (2D, 1); bias: (1, 1).

    Returns (V, E, 1) float32 edge logits.
    """
    n_views, n_nodes, d = embeds.shape
    n_edges = src.shape[1]

    # ---- reassociated Linear weights: w2t rows = [w1 ; w2], bias folded into row 0
    w2t = jnp.concatenate([weight_t[:d, :].T, weight_t[d:, :].T], axis=0)  # (2, D)
    bias2 = jnp.concatenate(
        [bias.reshape(1, 1).astype(jnp.float32),
         jnp.zeros((1, 1), jnp.float32)], axis=0)                          # (2, 1)

    # ---- node padding / tiling (keep the lane axis a multiple of 128) ----
    n_pad = _round_up(n_nodes, 128)
    tm = min(node_tile, n_pad)
    n_pad = _round_up(n_pad, tm)
    emb_p = jnp.pad(embeds.astype(jnp.float32),
                    ((0, 0), (0, n_pad - n_nodes), (0, 0)))

    # ---- Kernel A: per-node score table, (V, 2, Npad), lane-dense along N ----
    scores = pl.pallas_call(
        _node_scores_kernel,
        out_shape=jax.ShapeDtypeStruct((n_views, 2, n_pad), jnp.float32),
        grid=(n_views, n_pad // tm),
        in_specs=[
            pl.BlockSpec((None, tm, d), lambda vi, ni: (vi, ni, 0)),   # emb tile
            pl.BlockSpec((2, d), lambda vi, ni: (0, 0)),               # w2t (resident)
            pl.BlockSpec((2, 1), lambda vi, ni: (0, 0)),               # bias (resident)
        ],
        out_specs=pl.BlockSpec((None, 2, tm), lambda vi, ni: (vi, 0, ni)),
        compiler_params=pltpu.CompilerParams(
            dimension_semantics=("parallel", "parallel"),
            vmem_limit_bytes=32 * 1024 * 1024),
    )(emb_p, w2t.astype(jnp.float32), bias2)

    # ---- edge padding, lane-major (V, 1, Epad) rows (pad, don't assert) ----
    n_tiles = pl.cdiv(n_edges, tile_edges)
    e_pad = n_tiles * tile_edges
    pad_e = e_pad - n_edges
    src_p = jnp.pad(src.astype(jnp.int32), ((0, 0), (0, pad_e))).reshape(
        n_views, 1, e_pad)
    dst_p = jnp.pad(dst.astype(jnp.int32), ((0, 0), (0, pad_e))).reshape(
        n_views, 1, e_pad)

    cost = pl.CostEstimate(
        flops=2 * 2 * n_pad * e_pad * n_views,
        transcendentals=0,
        bytes_accessed=(3 * e_pad + 2 * n_pad) * 4 * n_views,
    )

    # ---- Kernel B: per-edge gather + add over (view, edge-tile) grid ----
    out = pl.pallas_call(
        _edge_gather_kernel,
        out_shape=jax.ShapeDtypeStruct((n_views, 1, e_pad), jnp.float32),
        grid=(n_views, n_tiles),
        in_specs=[
            pl.BlockSpec((None, 1, tile_edges), lambda vi, ei: (vi, 0, ei)),  # src
            pl.BlockSpec((None, 1, tile_edges), lambda vi, ei: (vi, 0, ei)),  # dst
            pl.BlockSpec((None, 2, n_pad), lambda vi, ei: (vi, 0, 0)),        # scores
        ],
        out_specs=pl.BlockSpec((None, 1, tile_edges), lambda vi, ei: (vi, 0, ei)),
        compiler_params=pltpu.CompilerParams(
            dimension_semantics=("parallel", "parallel"),
            vmem_limit_bytes=32 * 1024 * 1024),
        cost_estimate=cost,
    )(src_p, dst_p, scores)

    # (V, 1, Epad) -> (V, E, 1); padded tail lanes are dropped here.
    return out[:, 0, :n_edges][..., None]


# ------------------------------ Generator -----------------------------------
class Generator:
    """JAX/Pallas port of the PyTorch Generator module."""

    def __init__(self, encoder_fn, n_components, key):
        self.encoder = encoder_fn
        self.input_dim = n_components
        # Linear(2*D -> 1): xavier_uniform weight (out=1, in=2D), bias = 0
        fan_in, fan_out = 2 * n_components, 1
        bound = (6.0 / (fan_in + fan_out)) ** 0.5
        w = jax.random.uniform(key, (fan_out, fan_in), jnp.float32, -bound, bound)
        self.weight_t = w.T                                   # (2D, 1)
        self.bias = jnp.zeros((1, 1), jnp.float32)

    def __call__(self, feats, adj_list, edge_index_list):
        z_mp, embeds_list = self.encoder(feats, adj_list)
        n_views = len(adj_list)

        same_emb = len({e.shape for e in embeds_list}) == 1
        same_edges = len({tuple(ei.shape) for ei in edge_index_list}) == 1
        if same_emb and same_edges:
            # Batch all views onto one leading grid axis (single pallas_call pair).
            emb_stack = jnp.stack(embeds_list, axis=0)                       # (V,N,D)
            src_stack = jnp.stack([ei[0] for ei in edge_index_list], axis=0)  # (V,E)
            dst_stack = jnp.stack([ei[1] for ei in edge_index_list], axis=0)  # (V,E)
            logits = edge_logits_pallas(emb_stack, src_stack, dst_stack,
                                        self.weight_t, self.bias)            # (V,E,1)
            return [logits[i] for i in range(n_views)]

        # Fallback: heterogeneous views (different N or E) -> per-view calls.
        edge_logits_list = []
        for i in range(n_views):
            src, dst = edge_index_list[i][0], edge_index_list[i][1]
            logits = edge_logits_pallas(embeds_list[i][None], src[None], dst[None],
                                        self.weight_t, self.bias)
            edge_logits_list.append(logits[0])
        return edge_logits_list


# -------------------- deterministic stand-in encoder (glue) -----------------
def make_encoder(w_enc):
    def encoder(feats, adj_list):
        embeds_list = [jnp.tanh(adj @ feats @ w_enc) for adj in adj_list]
        z_mp = sum(embeds_list) / len(embeds_list)
        return z_mp, embeds_list
    return encoder


# ------------------------------- reference ----------------------------------
def edge_logits_ref(embeds, src, dst, weight_t, bias):
    emb_src = embeds[src]
    emb_dst = embeds[dst]
    edge_emb = jnp.concatenate([emb_src, emb_dst], axis=1)
    return edge_emb @ weight_t + bias[0, 0]


if __name__ == "__main__":
    key = jax.random.PRNGKey(0)
    k_feat, k_adj, k_edge, k_enc, k_lin = jax.random.split(key, 5)

    N_NODES = 64        # nodes per graph view (pads to 128 lanes)
    N_FEATS = 16        # raw feature dim
    N_COMPONENTS = 32   # args.n_components (embedding dim D)
    N_VIEWS = 2         # len(adj_list)
    N_EDGES = 1000      # edges per view (NOT a tile multiple -> exercises padding)

    feats = jax.random.normal(k_feat, (N_NODES, N_FEATS), jnp.float32)
    adj_keys = jax.random.split(k_adj, N_VIEWS)
    adj_list = [
        (jax.random.uniform(adj_keys[v], (N_NODES, N_NODES)) > 0.7)
        .astype(jnp.float32)
        for v in range(N_VIEWS)
    ]
    edge_keys = jax.random.split(k_edge, N_VIEWS)
    edge_index_list = [
        jax.random.randint(edge_keys[v], (2, N_EDGES), 0, N_NODES, jnp.int32)
        for v in range(N_VIEWS)
    ]

    w_enc = jax.random.normal(k_enc, (N_FEATS, N_COMPONENTS), jnp.float32) * 0.1
    gen = Generator(make_encoder(w_enc), N_COMPONENTS, k_lin)

    edge_logits_list = gen(feats, adj_list, edge_index_list)
    edge_logits_list = [jax.block_until_ready(x) for x in edge_logits_list]

    # correctness check vs. pure-JAX reference of the gather+concat+Linear path
    _, embeds_list = make_encoder(w_enc)(feats, adj_list)
    for i in range(N_VIEWS):
        ref = edge_logits_ref(embeds_list[i],
                              edge_index_list[i][0], edge_index_list[i][1],
                              gen.weight_t, gen.bias)
        assert edge_logits_list[i].shape == (N_EDGES, 1)
        assert jnp.allclose(edge_logits_list[i], ref, atol=1e-4, rtol=1e-4)

    print("KERNEL_OK")
</pallas_src>

<mosaic_0001>
module attributes {stable_mosaic.version = 11 : i64} {
  func.func @_node_scores_kernel(%arg0: i32, %arg1: i32, %arg2: memref<1x128x32xf32, #tpu.memory_space<vmem>>, %arg3: memref<2x32xf32, #tpu.memory_space<vmem>>, %arg4: memref<2x1xf32, #tpu.memory_space<vmem>>, %arg5: memref<1x2x128xf32, #tpu.memory_space<vmem>>) attributes {dimension_semantics = [#tpu.dimension_semantics<parallel>, #tpu.dimension_semantics<parallel>], iteration_bounds = array<i64: 2, 1>, scalar_prefetch = 0 : i64, scratch_operands = 0 : i64, tpu.core_type = #tpu.core_type<tc>, window_params = [{transform_indices = @transform_0, window_bounds = array<i64: 1, 128, 32>}, {pipeline_mode = #tpu.pipeline_mode<synchronous>, transform_indices = @transform_1, window_bounds = array<i64: 2, 32>}, {pipeline_mode = #tpu.pipeline_mode<synchronous>, transform_indices = @transform_2, window_bounds = array<i64: 2, 1>}, {transform_indices = @transform_3, window_bounds = array<i64: 1, 2, 128>}]} {
    %c0 = arith.constant 0 : index
    %c0_0 = arith.constant 0 : index
    %0 = vector.load %arg3[%c0, %c0_0] : memref<2x32xf32, #tpu.memory_space<vmem>>, vector<2x32xf32>
    %c0_1 = arith.constant 0 : index
    %c0_2 = arith.constant 0 : index
    %c0_3 = arith.constant 0 : index
    %1 = vector.load %arg2[%c0_1, %c0_2, %c0_3] : memref<1x128x32xf32, #tpu.memory_space<vmem>>, vector<1x128x32xf32>
    %2 = vector.shape_cast %1 : vector<1x128x32xf32> to vector<128x32xf32>
    %cst = arith.constant dense<0.000000e+00> : vector<2x128xf32>
    %3 = tpu.matmul %0, %2, %cst {dimension_numbers = #tpu.dot_dimension_numbers<[1], [1], [0], [0], [0, 0, 1, 0], [], []>} : vector<2x32xf32>, vector<128x32xf32>, vector<2x128xf32> -> vector<2x128xf32>
    %c0_4 = arith.constant 0 : index
    %c0_5 = arith.constant 0 : index
    %4 = vector.load %arg4[%c0_4, %c0_5] : memref<2x1xf32, #tpu.memory_space<vmem>>, vector<2x1xf32>
    %5 = vector.broadcast %4 : vector<2x1xf32> to vector<2x128xf32>
    %6 = arith.addf %3, %5 : vector<2x128xf32>
    %c0_6 = arith.constant 0 : index
    %c0_7 = arith.constant 0 : index
    %c0_8 = arith.constant 0 : index
    %7 = vector.load %arg5[%c0_6, %c0_7, %c0_8] : memref<1x2x128xf32, #tpu.memory_space<vmem>>, vector<1x2x128xf32>
    %8 = vector.shape_cast %7 : vector<1x2x128xf32> to vector<2x128xf32>
    %9 = vector.shape_cast %6 : vector<2x128xf32> to vector<1x2x128xf32>
    tpu.vector_store %arg5[%c0_6, %c0_7, %c0_8], %9 {strides = array<i32>} : memref<1x2x128xf32, #tpu.memory_space<vmem>>, vector<1x2x128xf32>,
    return
  }
  func.func @transform_0(%arg0: i32, %arg1: i32) -> (i32, i32, i32) {
    %c0_i32 = arith.constant 0 : i32
    %c0_i32_0 = arith.constant 0 : i32
    return %arg0, %arg1, %c0_i32 : i32, i32, i32
  }
  func.func @transform_1(%arg0: i32, %arg1: i32) -> (i32, i32) {
    %c0_i32 = arith.constant 0 : i32
    %c0_i32_0 = arith.constant 0 : i32
    %c0_i32_1 = arith.constant 0 : i32
    return %c0_i32, %c0_i32_0 : i32, i32
  }
  func.func @transform_2(%arg0: i32, %arg1: i32) -> (i32, i32) {
    %c0_i32 = arith.constant 0 : i32
    %c0_i32_0 = arith.constant 0 : i32
    %c0_i32_1 = arith.constant 0 : i32
    return %c0_i32, %c0_i32_0 : i32, i32
  }
  func.func @transform_3(%arg0: i32, %arg1: i32) -> (i32, i32, i32) {
    %c0_i32 = arith.constant 0 : i32
    %c0_i32_0 = arith.constant 0 : i32
    return %arg0, %c0_i32, %arg1 : i32, i32, i32
  }
}

module attributes {stable_mosaic.version = 11 : i64} {
  func.func @_edge_gather_kernel(%arg0: i32, %arg1: i32, %arg2: memref<1x1x1024xi32, #tpu.memory_space<vmem>>, %arg3: memref<1x1x1024xi32, #tpu.memory_space<vmem>>, %arg4: memref<1x2x128xf32, #tpu.memory_space<vmem>>, %arg5: memref<1x1x1024xf32, #tpu.memory_space<vmem>>) attributes {dimension_semantics = [#tpu.dimension_semantics<parallel>, #tpu.dimension_semantics<parallel>], iteration_bounds = array<i64: 2, 1>, scalar_prefetch = 0 : i64, scratch_operands = 0 : i64, tpu.core_type = #tpu.core_type<tc>, window_params = [{transform_indices = @transform_0, window_bounds = array<i64: 1, 1, 1024>}, {transform_indices = @transform_1, window_bounds = array<i64: 1, 1, 1024>}, {transform_indices = @transform_2, window_bounds = array<i64: 1, 2, 128>}, {transform_indices = @transform_3, window_bounds = array<i64: 1, 1, 1024>}]} {
    %0 = tpu.iota {dimensions = array<i32: 0>} : vector<128x1xi32>
    %c0 = arith.constant 0 : index
    %c0_0 = arith.constant 0 : index
    %c0_1 = arith.constant 0 : index
    %1 = vector.load %arg2[%c0, %c0_0, %c0_1] : memref<1x1x1024xi32, #tpu.memory_space<vmem>>, vector<1x1x1024xi32>
    %2 = vector.shape_cast %1 : vector<1x1x1024xi32> to vector<1x1024xi32>
    %3 = vector.broadcast %0 : vector<128x1xi32> to vector<128x1024xi32>
    %4 = vector.broadcast %2 : vector<1x1024xi32> to vector<128x1024xi32>
    %5 = arith.cmpi eq, %3, %4 : vector<128x1024xi32>
    %6 = arith.extui %5 : vector<128x1024xi1> to vector<128x1024xi32>
    %7 = arith.sitofp %6 : vector<128x1024xi32> to vector<128x1024xf32>
    %c0_2 = arith.constant 0 : index
    %c0_3 = arith.constant 0 : index
    %c0_4 = arith.constant 0 : index
    %8 = vector.load %arg3[%c0_2, %c0_3, %c0_4] : memref<1x1x1024xi32, #tpu.memory_space<vmem>>, vector<1x1x1024xi32>
    %9 = vector.shape_cast %8 : vector<1x1x1024xi32> to vector<1x1024xi32>
    %10 = vector.broadcast %0 : vector<128x1xi32> to vector<128x1024xi32>
    %11 = vector.broadcast %9 : vector<1x1024xi32> to vector<128x1024xi32>
    %12 = arith.cmpi eq, %10, %11 : vector<128x1024xi32>
    %13 = arith.extui %12 : vector<128x1024xi1> to vector<128x1024xi32>
    %14 = arith.sitofp %13 : vector<128x1024xi32> to vector<128x1024xf32>
    %c0_5 = arith.constant 0 : index
    %c0_6 = arith.constant 0 : index
    %c0_7 = arith.constant 0 : index
    %15 = vector.load %arg4[%c0_5, %c0_6, %c0_7] : memref<1x2x128xf32, #tpu.memory_space<vmem>>, vector<1x2x128xf32>
    %16 = vector.shape_cast %15 : vector<1x2x128xf32> to vector<2x128xf32>
    %17 = vector.extract_strided_slice %16 {offsets = [0, 0], sizes = [1, 128], strides = [1, 1]} : vector<2x128xf32> to vector<1x128xf32>
    %cst = arith.constant dense<0.000000e+00> : vector<1x1024xf32>
    %18 = tpu.matmul %17, %7, %cst {dimension_numbers = #tpu.dot_dimension_numbers<[1], [0], [0], [1], [0, 0, 1, 1], [], []>} : vector<1x128xf32>, vector<128x1024xf32>, vector<1x1024xf32> -> vector<1x1024xf32>
    %19 = vector.extract_strided_slice %16 {offsets = [1, 0], sizes = [1, 128], strides = [1, 1]} : vector<2x128xf32> to vector<1x128xf32>
    %cst_8 = arith.constant dense<0.000000e+00> : vector<1x1024xf32>
    %20 = tpu.matmul %19, %14, %cst_8 {dimension_numbers = #tpu.dot_dimension_numbers<[1], [0], [0], [1], [0, 0, 1, 1], [], []>} : vector<1x128xf32>, vector<128x1024xf32>, vector<1x1024xf32> -> vector<1x1024xf32>
    %21 = arith.addf %18, %20 : vector<1x1024xf32>
    %c0_9 = arith.constant 0 : index
    %c0_10 = arith.constant 0 : index
    %c0_11 = arith.constant 0 : index
    %22 = vector.load %arg5[%c0_9, %c0_10, %c0_11] : memref<1x1x1024xf32, #tpu.memory_space<vmem>>, vector<1x1x1024xf32>
    %23 = vector.shape_cast %22 : vector<1x1x1024xf32> to vector<1x1024xf32>
    %24 = vector.shape_cast %21 : vector<1x1024xf32> to vector<1x1x1024xf32>
    tpu.vector_store %arg5[%c0_9, %c0_10, %c0_11], %24 {strides = array<i32>} : memref<1x1x1024xf32, #tpu.memory_space<vmem>>, vector<1x1x1024xf32>,
    return
  }
  func.func @transform_0(%arg0: i32, %arg1: i32) -> (i32, i32, i32) {
    %c0_i32 = arith.constant 0 : i32
    %c0_i32_0 = arith.constant 0 : i32
    return %arg0, %c0_i32, %arg1 : i32, i32, i32
  }
  func.func @transform_1(%arg0: i32, %arg1: i32) -> (i32, i32, i32) {
    %c0_i32 = arith.constant 0 : i32
    %c0_i32_0 = arith.constant 0 : i32
    return %arg0, %c0_i32, %arg1 : i32, i32, i32
  }
  func.func @transform_2(%arg0: i32, %arg1: i32) -> (i32, i32, i32) {
    %c0_i32 = arith.constant 0 : i32
    %c0_i32_0 = arith.constant 0 : i32
    %c0_i32_1 = arith.constant 0 : i32
    return %arg0, %c0_i32, %c0_i32_0 : i32, i32, i32
  }
  func.func @transform_3(%arg0: i32, %arg1: i32) -> (i32, i32, i32) {
    %c0_i32 = arith.constant 0 : i32
    %c0_i32_0 = arith.constant 0 : i32
    return %arg0, %c0_i32, %arg1 : i32, i32, i32
  }
}

</mosaic_0001>

<llo_original>
// kernel: edge_logits_pallas.2
$region0: #{edge_logits_pallas.2}
  #allocation0 [shape = 'u32[]', space=smem, size = 0x4, offset = 0x4, fixed_abs, tag = 'smem constant byte address 0x4 - core index']
  #allocation1 [shape = 'u32[72,128]{1,0:T(1,128)}', space=vmem, size = 0x9000, scoped, tag = 'internal scratch']
  %s0 = inlined_call_operand.vmem [shape: f32[2,128,32], index: 0, kind: input, shape index: {}]
  %s1 = inlined_call_operand.vmem [shape: f32[2,32], index: 1, kind: input, shape index: {}]
  %s2 = inlined_call_operand.vmem [shape: f32[2,1], index: 2, kind: input, shape index: {}]
  %s3 = inlined_call_operand.vmem [shape: f32[2,2,128], index: 3, kind: output, shape index: {}]
  %s4 = sld [smem:[#allocation0]]
  $region45: #{edge_logits_pallas.2} parent=0
    _
  %s6 = ssub.s32 1, %s4
  %s7 = scalar_select 0, %s6, %s4
  loop: start=0, step=1, limit=4
  $region2: #{edge_logits_pallas.2} parent=0 // loop_pre_header
    _
  $region3: #{edge_logits_pallas.2} parent=0 // loop_header
    %s9 = sphi 0, %s13
    %p10 = scmp.ge.s32.totalorder %s9, 4
    %s16 = sphi 0, %s28
    %s17 = sphi 0, %s24
    %s18 = sphi 0, %s16
    %s19 = sphi 0, %s17
    %s20 = sphi 0, %s18
    %s21 = sphi 0, %s19
    %s33 = sphi 0, %s35
    %s36 = sphi 0, %s33
    %s37 = sphi 0, %s36
    %s53 = sphi 0, %s37
    %s57 = sphi 0, %s57
    %s59 = sphi 0, %s57
    %s60 = sphi 0, %s59
    %s74 = sphi 0, %s60
    %s78 = sphi 0, %s78
    %s80 = sphi 0, %s78
    %s81 = sphi 0, %s80
    %s95 = sphi 0, %s81
    %s103 = sphi 0, %s105
    %s106 = sphi 0, %s103
    %s107 = sphi 0, %s106
    %s123 = sphi 0, %s107
  $region4: #{edge_logits_pallas.2} parent=0 // loop_header_branch
    %12 = sbr.rel (%p10) target = $region8
  $region5: #{edge_logits_pallas.2} parent=0 // loop_body
    %s14 = ssub.s32 %s9, 1
    %s15 = ssub.s32 %s9, 2
    %s22 = sadd.s32 1, %s17
    %p23 = scmp.ge.s32.totalorder %s22, 1
    %s24 = scalar_select %p23, 0, %s22
    %s25 = sadd.s32 1, %s16
    %s26 = scalar_select %p23, %s25, %s16
    %p27 = scmp.ge.s32.totalorder %s26, 2
    %s28 = scalar_select %p27, 0, %s26
    %s29 = ssub.s32 %s16, %s28
    %s30 = ssub.s32 %s17, %s24
    %s31 = sor.u32 %s29, %s30
    %p32 = scmp.eq.s32.totalorder %s31, 0
    %s34 = sadd.s32 %s33, 1
    %s35 = scalar_select %p32, %s33, %s34
    %p38 = pneg %p32
    %p39 = scmp.eq.s32.totalorder %s9, 1
    %p40 = por %p38, %p39
    %p41 = scmp.ne.s32.totalorder %s33, %s36
    %p42 = scmp.eq.s32.totalorder %s9, 0
    %p43 = por %p41, %p42
    %p44 = scmp.ne.s32.totalorder %s33, %s36
    %p45 = scmp.eq.s32.totalorder %s14, 1
    %p46 = por %p44, %p45
    %p47 = scmp.ne.s32.totalorder %s36, %s37
    %p48 = scmp.eq.s32.totalorder %s14, 0
    %p49 = por %p47, %p48
    %p50 = scmp.ne.s32.totalorder %s36, %s37
    %p51 = scmp.eq.s32.totalorder %s15, 1
    %p52 = por %p50, %p51
    %p54 = scmp.ne.s32.totalorder %s37, %s53
    %p55 = scmp.eq.s32.totalorder %s15, 0
    %p56 = por %p54, %p55
    %s58 = sadd.s32 %s57, 1
    %p61 = scmp.eq.s32.totalorder %s9, 1
    %p62 = scmp.ne.s32.totalorder %s57, %s59
    %p63 = scmp.eq.s32.totalorder %s9, 0
    %p64 = por %p62, %p63
    %p65 = scmp.ne.s32.totalorder %s57, %s59
    %p66 = scmp.eq.s32.totalorder %s14, 1
    %p67 = por %p65, %p66
    %p68 = scmp.ne.s32.totalorder %s59, %s60
    %p69 = scmp.eq.s32.totalorder %s14, 0
    %p70 = por %p68, %p69
    %p71 = scmp.ne.s32.totalorder %s59, %s60
    %p72 = scmp.eq.s32.totalorder %s15, 1
    %p73 = por %p71, %p72
    %p75 = scmp.ne.s32.totalorder %s60, %s74
    %p76 = scmp.eq.s32.totalorder %s15, 0
    %p77 = por %p75, %p76
    %s79 = sadd.s32 %s78, 1
    %p82 = scmp.eq.s32.totalorder %s9, 1
    %p83 = scmp.ne.s32.totalorder %s78, %s80
    %p84 = scmp.eq.s32.totalorder %s9, 0
    %p85 = por %p83, %p84
    %p86 = scmp.ne.s32.totalorder %s78, %s80
    %p87 = scmp.eq.s32.totalorder %s14, 1
    %p88 = por %p86, %p87
    %p89 = scmp.ne.s32.totalorder %s80, %s81
    %p90 = scmp.eq.s32.totalorder %s14, 0
    %p91 = por %p89, %p90
    %p92 = scmp.ne.s32.totalorder %s80, %s81
    %p93 = scmp.eq.s32.totalorder %s15, 1
    %p94 = por %p92, %p93
    %p96 = scmp.ne.s32.totalorder %s81, %s95
    %p97 = scmp.eq.s32.totalorder %s15, 0
    %p98 = por %p96, %p97
    %s99 = ssub.s32 %s16, %s28
    %s100 = ssub.s32 %s17, %s24
    %s101 = sor.u32 %s99, %s100
    %p102 = scmp.eq.s32.totalorder %s101, 0
    %s104 = sadd.s32 %s103, 1
    %s105 = scalar_select %p102, %s103, %s104
    %p108 = pneg %p102
    %p109 = scmp.eq.s32.totalorder %s9, 1
    %p110 = por %p108, %p109
    %p111 = scmp.ne.s32.totalorder %s103, %s106
    %p112 = scmp.eq.s32.totalorder %s9, 0
    %p113 = por %p111, %p112
    %p114 = scmp.ne.s32.totalorder %s103, %s106
    %p115 = scmp.eq.s32.totalorder %s14, 1
    %p116 = por %p114, %p115
    %p117 = scmp.ne.s32.totalorder %s106, %s107
    %p118 = scmp.eq.s32.totalorder %s14, 0
    %p119 = por %p117, %p118
    %p120 = scmp.ne.s32.totalorder %s106, %s107
    %p121 = scmp.eq.s32.totalorder %s15, 1
    %p122 = por %p120, %p121
    %p124 = scmp.ne.s32.totalorder %s107, %s123
    %p125 = scmp.eq.s32.totalorder %s15, 0
    %p126 = por %p124, %p125
    %p127 = scmp.le.s32.totalorder 1, %s9
    %p128 = scmp.lt.s32.totalorder %s9, 3
    %p129 = pnand %p127, %p128
    %p130 = pneg %p129
    // Predicated region
    $region9: #{edge_logits_pallas.2} parent=5 // pred_check
      _
    $region10: #{edge_logits_pallas.2} parent=5 // pred_check_branch
      %132 = sbr.rel (%p129) target = $region12
    $region11: #{edge_logits_pallas.2} parent=5 // pred_region
      %s133 = ssub.s32 %s9, 1
      // Predicated region
      $region13: #{edge_logits_pallas.2} parent=11 // pred_check
        %p134 = pneg %p70
      $region14: #{edge_logits_pallas.2} parent=11 // pred_check_branch
        %136 = sbr.rel (%p134) target = $region16
      $region15: #{edge_logits_pallas.2} parent=11 // pred_region
        _
      $region16: #{edge_logits_pallas.2} parent=11 // pred_fallthru
        _
      // Predicated region
      $region17: #{edge_logits_pallas.2} parent=11 // pred_check
        %p137 = pneg %p91
      $region18: #{edge_logits_pallas.2} parent=11 // pred_check_branch
        %139 = sbr.rel (%p137) target = $region20
      $region19: #{edge_logits_pallas.2} parent=11 // pred_region
        _
      $region20: #{edge_logits_pallas.2} parent=11 // pred_fallthru
        _
    $region12: #{edge_logits_pallas.2} parent=5 // pred_fallthru
      _
    %p140 = scmp.lt.s32.totalorder %s9, 2
    // Predicated region
    $region21: #{edge_logits_pallas.2} parent=5 // pred_check
      %p141 = pneg %p140
    $region22: #{edge_logits_pallas.2} parent=5 // pred_check_branch
      %143 = sbr.rel (%p141) target = $region24
    $region23: #{edge_logits_pallas.2} parent=5 // pred_region
      // Predicated region
      $region25: #{edge_logits_pallas.2} parent=23 // pred_check
        %p144 = pneg %p43
      $region26: #{edge_logits_pallas.2} parent=23 // pred_check_branch
        %146 = sbr.rel (%p144) target = $region28
      $region27: #{edge_logits_pallas.2} parent=23 // pred_region
        %s147 = smul.u32 16, %s17
        %p148 = scmp.lt.s32.totalorder %s16, 1
        %s149 = scalar_select %p148, %s16, 1
        %p150 = scmp.lt.s32.totalorder %s147, 15
        %s151 = scalar_select %p150, %s147, 15
        %s152 = smul.addr %s149, 16
        %s153 = sadd.s32 %s151, %s152
        %s154 = smul.addr %s153, 8
        %s155 = scalar_lea.vmem %s0, %s154
        %s156 = smul.u32 16, %s17
      $region28: #{edge_logits_pallas.2} parent=23 // pred_fallthru
        _
    $region24: #{edge_logits_pallas.2} parent=5 // pred_fallthru
      _
    %p157 = scmp.le.s32.totalorder 1, %s9
    %p158 = scmp.lt.s32.totalorder %s9, 3
    %p159 = pnand %p157, %p158
    %p160 = pneg %p159
    // Predicated region
    $region29: #{edge_logits_pallas.2} parent=5 // pred_check
      _
    $region30: #{edge_logits_pallas.2} parent=5 // pred_check_branch
      %162 = sbr.rel (%p159) target = $region32
    $region31: #{edge_logits_pallas.2} parent=5 // pred_region
      %s163 = ssub.s32 %s9, 1
      %s164 = smul.u32 16, %s19
      %p165 = scmp.lt.s32.totalorder %s18, 1
      %s166 = scalar_select %p165, %s18, 1
      %p167 = scmp.lt.s32.totalorder %s164, 15
      %s168 = scalar_select %p167, %s164, 15
      %s169 = smul.addr %s166, 16
      %s170 = sadd.s32 %s168, %s169
      %s171 = smul.addr %s170, 8
      %s172 = scalar_lea.vmem %s0, %s171
      %p173 = pneg %p49
      %p174 = pneg %p46
      %p175 = pneg %p70
      %p176 = pneg %p67
      %p177 = pneg %p91
      %p178 = pneg %p88
      %p179 = pneg %p119
      %p180 = pneg %p116
      %p181 = scmp.lt.s32.totalorder %s18, 1
      %s182 = scalar_select %p181, %s18, 1
      %p183 = scmp.lt.s32.totalorder %s19, 0
      %s184 = scalar_select %p183, %s19, 0
      %s185 = sadd.s32 %s184, %s182
      %s186 = smul.addr %s185, 2
      %s187 = scalar_lea.vmem %s3, %s186
      %s188 = smul.u32 16, %s19
      %p189 = scmp.lt.s32.totalorder %s18, 1
      %s190 = scalar_select %p189, %s18, 1
      %p191 = scmp.lt.s32.totalorder %s188, 15
      %s192 = scalar_select %p191, %s188, 15
      %s193 = smul.addr %s190, 16
      %s194 = sadd.s32 %s192, %s193
      %s195 = smul.addr %s194, 8
      %s196 = scalar_lea.vmem %s0, %s195
      %s197 = smul.u32 16, %s19
      %p198 = scmp.lt.s32.totalorder %s18, 1
      %s199 = scalar_select %p198, %s18, 1
      %p200 = scmp.lt.s32.totalorder %s19, 0
      %s201 = scalar_select %p200, %s19, 0
      %s202 = sadd.s32 %s201, %s199
      %s203 = smul.addr %s202, 2
      %s204 = scalar_lea.vmem %s3, %s203
      %v205 = vld [vmem:[%s1] sm:$0x3]
      %v206 = vld [vmem:[%s196] sm:$0xff]
      %v207 = vld [vmem:[%s196 + $0x8] sm:$0xff]
      %v208 = vld [vmem:[%s196 + $0x10] sm:$0xff]
      %v209 = vld [vmem:[%s196 + $0x18] sm:$0xff]
      %v210 = vld [vmem:[%s196 + $0x20] sm:$0xff]
      %v211 = vld [vmem:[%s196 + $0x28] sm:$0xff]
      %v212 = vld [vmem:[%s196 + $0x30] sm:$0xff]
      %v213 = vld [vmem:[%s196 + $0x38] sm:$0xff]
      %v214 = vld [vmem:[%s196 + $0x40] sm:$0xff]
      %v215 = vld [vmem:[%s196 + $0x48] sm:$0xff]
      %v216 = vld [vmem:[%s196 + $0x50] sm:$0xff]
      %v217 = vld [vmem:[%s196 + $0x58] sm:$0xff]
      %v218 = vld [vmem:[%s196 + $0x60] sm:$0xff]
      %v219 = vld [vmem:[%s196 + $0x68] sm:$0xff]
      %v220 = vld [vmem:[%s196 + $0x70] sm:$0xff]
      %v221 = vld [vmem:[%s196 + $0x78] sm:$0xff]
      %v222 = vld [vmem:[%s2] sm:$0x3]
      %224 = vset.pattern.permute.xlu0 0
      %225 = vperm.xlu0 %224, %v222
      %v226 = vpop.permute.xlu0 %225
      %vm228 = vcmask 261120
      %v230 = vsel %vm228, %v205, 0
      %v233 = vsel %vm228, %v206, 0
      %v236 = vsel %vm228, %v207, 0
      %v239 = vsel %vm228, %v208, 0
      %v242 = vsel %vm228, %v209, 0
      %v245 = vsel %vm228, %v210, 0
      %v248 = vsel %vm228, %v211, 0
      %v251 = vsel %vm228, %v212, 0
      %v254 = vsel %vm228, %v213, 0
      %v257 = vsel %vm228, %v214, 0
      %v260 = vsel %vm228, %v215, 0
      %v263 = vsel %vm228, %v216, 0
      %v266 = vsel %vm228, %v217, 0
      %v269 = vsel %vm228, %v218, 0
      %v272 = vsel %vm228, %v219, 0
      %v275 = vsel %vm228, %v220, 0
      %v278 = vsel %vm228, %v221, 0
      %280 = vmatpush.xpose.msra.mxu0 %v278
      %281 = vmatpush.xpose.msra.mxu0 %v275
      %282 = vmatpush.xpose.msra.mxu0 %v272
      %283 = vmatpush.xpose.msra.mxu0 %v269
      %284 = vmatpush.xpose.msra.mxu0 %v266
      %285 = vmatpush.xpose.msra.mxu0 %v263
      %286 = vmatpush.xpose.msra.mxu0 %v260
      %287 = vmatpush.xpose.msra.mxu0 %v257
      %288 = vmatpush.xpose.msra.mxu0 %v254
      %289 = vmatpush.xpose.msra.mxu0 %v251
      %290 = vmatpush.xpose.msra.mxu0 %v248
      %291 = vmatpush.xpose.msra.mxu0 %v245
      %292 = vmatpush.xpose.msra.mxu0 %v242
      %293 = vmatpush.xpose.msra.mxu0 %v239
      %294 = vmatpush.xpose.msra.mxu0 %v236
      %295 = vmatpush.xpose.msra.mxu0 %v233
      %296 = vmatmul.f32.gmra.mxu0 %v230
      %v297 = vpop.f32.mrf.mxu0
      %v298 = vadd.f32 %v226, %v297
      %299 = vdwg.mxu0
      %300 = vst [vmem:[%s204] sm:$0x3] %v298
      %p301 = scmp.lt.s32.totalorder %s18, 1
      %s302 = scalar_select %p301, %s18, 1
      %p303 = scmp.lt.s32.totalorder %s19, 0
      %s304 = scalar_select %p303, %s19, 0
      %s305 = sadd.s32 %s304, %s302
      %s306 = smul.addr %s305, 2
      %s307 = scalar_lea.vmem %s3, %s306
      // Predicated region
      $region33: #{edge_logits_pallas.2} parent=31 // pred_check
        %p308 = pneg %p116
      $region34: #{edge_logits_pallas.2} parent=31 // pred_check_branch
        %310 = sbr.rel (%p308) target = $region36
      $region35: #{edge_logits_pallas.2} parent=31 // pred_region
        _
      $region36: #{edge_logits_pallas.2} parent=31 // pred_fallthru
        _
    $region32: #{edge_logits_pallas.2} parent=5 // pred_fallthru
      _
    %p311 = scmp.le.s32.totalorder 2, %s9
    // Predicated region
    $region37: #{edge_logits_pallas.2} parent=5 // pred_check
      %p312 = pneg %p311
    $region38: #{edge_logits_pallas.2} parent=5 // pred_check_branch
      %314 = sbr.rel (%p312) target = $region40
    $region39: #{edge_logits_pallas.2} parent=5 // pred_region
      %s315 = ssub.s32 %s9, 2
      // Predicated region
      $region41: #{edge_logits_pallas.2} parent=39 // pred_check
        %p316 = pneg %p122
      $region42: #{edge_logits_pallas.2} parent=39 // pred_check_branch
        %318 = sbr.rel (%p316) target = $region44
      $region43: #{edge_logits_pallas.2} parent=39 // pred_region
        %p319 = scmp.lt.s32.totalorder %s20, 1
        %s320 = scalar_select %p319, %s20, 1
        %p321 = scmp.lt.s32.totalorder %s21, 0
        %s322 = scalar_select %p321, %s21, 0
        %s323 = sadd.s32 %s322, %s320
        %s324 = smul.addr %s323, 2
        %s325 = scalar_lea.vmem %s3, %s324
      $region44: #{edge_logits_pallas.2} parent=39 // pred_fallthru
        _
    $region40: #{edge_logits_pallas.2} parent=5 // pred_fallthru
      _
  $region6: #{edge_logits_pallas.2} parent=0 // loop_footer
    %s13 = sadd.s32 1, %s9
  $region7: #{edge_logits_pallas.2} parent=0 // loop_footer_branch
    %8 = sbr.rel target = $region3
  $region8: #{edge_logits_pallas.2} parent=0 // loop_exit
    _

// kernel: edge_logits_pallas.3
$region0: #{edge_logits_pallas.3}
  #allocation0 [shape = 'u32[]', space=smem, size = 0x4, offset = 0x4, fixed_abs, tag = 'smem constant byte address 0x4 - core index']
  #allocation1 [shape = 'u32[72,128]{1,0:T(1,128)}', space=vmem, size = 0x9000, scoped, tag = 'internal scratch']
  %s0 = inlined_call_operand.vmem [shape: s32[2,1,1024], index: 0, kind: input, shape index: {}]
  %s1 = inlined_call_operand.vmem [shape: s32[2,1,1024], index: 1, kind: input, shape index: {}]
  %s2 = inlined_call_operand.vmem [shape: f32[2,2,128], index: 2, kind: input, shape index: {}]
  %s3 = inlined_call_operand.vmem [shape: f32[2,1,1024], index: 3, kind: output, shape index: {}]
  %s4 = sld [smem:[#allocation0]]
  $region45: #{edge_logits_pallas.3} parent=0
    _
  %s6 = ssub.s32 1, %s4
  %s7 = scalar_select 0, %s6, %s4
  loop: start=0, step=1, limit=4
  $region2: #{edge_logits_pallas.3} parent=0 // loop_pre_header
    _
  $region3: #{edge_logits_pallas.3} parent=0 // loop_header
    %s9 = sphi 0, %s13
    %p10 = scmp.ge.s32.totalorder %s9, 4
    %s16 = sphi 0, %s28
    %s17 = sphi 0, %s24
    %s18 = sphi 0, %s16
    %s19 = sphi 0, %s17
    %s20 = sphi 0, %s18
    %s21 = sphi 0, %s19
    %s33 = sphi 0, %s35
    %s36 = sphi 0, %s33
    %s37 = sphi 0, %s36
    %s53 = sphi 0, %s37
    %s61 = sphi 0, %s63
    %s64 = sphi 0, %s61
    %s65 = sphi 0, %s64
    %s81 = sphi 0, %s65
    %s87 = sphi 0, %s89
    %s90 = sphi 0, %s87
    %s91 = sphi 0, %s90
    %s107 = sphi 0, %s91
    %s115 = sphi 0, %s117
    %s118 = sphi 0, %s115
    %s119 = sphi 0, %s118
    %s135 = sphi 0, %s119
  $region4: #{edge_logits_pallas.3} parent=0 // loop_header_branch
    %12 = sbr.rel (%p10) target = $region8
  $region5: #{edge_logits_pallas.3} parent=0 // loop_body
    %s14 = ssub.s32 %s9, 1
    %s15 = ssub.s32 %s9, 2
    %s22 = sadd.s32 1, %s17
    %p23 = scmp.ge.s32.totalorder %s22, 1
    %s24 = scalar_select %p23, 0, %s22
    %s25 = sadd.s32 1, %s16
    %s26 = scalar_select %p23, %s25, %s16
    %p27 = scmp.ge.s32.totalorder %s26, 2
    %s28 = scalar_select %p27, 0, %s26
    %s29 = ssub.s32 %s16, %s28
    %s30 = ssub.s32 %s17, %s24
    %s31 = sor.u32 %s29, %s30
    %p32 = scmp.eq.s32.totalorder %s31, 0
    %s34 = sadd.s32 %s33, 1
    %s35 = scalar_select %p32, %s33, %s34
    %p38 = pneg %p32
    %p39 = scmp.eq.s32.totalorder %s9, 1
    %p40 = por %p38, %p39
    %p41 = scmp.ne.s32.totalorder %s33, %s36
    %p42 = scmp.eq.s32.totalorder %s9, 0
    %p43 = por %p41, %p42
    %p44 = scmp.ne.s32.totalorder %s33, %s36
    %p45 = scmp.eq.s32.totalorder %s14, 1
    %p46 = por %p44, %p45
    %p47 = scmp.ne.s32.totalorder %s36, %s37
    %p48 = scmp.eq.s32.totalorder %s14, 0
    %p49 = por %p47, %p48
    %p50 = scmp.ne.s32.totalorder %s36, %s37
    %p51 = scmp.eq.s32.totalorder %s15, 1
    %p52 = por %p50, %p51
    %p54 = scmp.ne.s32.totalorder %s37, %s53
    %p55 = scmp.eq.s32.totalorder %s15, 0
    %p56 = por %p54, %p55
    %s57 = ssub.s32 %s16, %s28
    %s58 = ssub.s32 %s17, %s24
    %s59 = sor.u32 %s57, %s58
    %p60 = scmp.eq.s32.totalorder %s59, 0
    %s62 = sadd.s32 %s61, 1
    %s63 = scalar_select %p60, %s61, %s62
    %p66 = pneg %p60
    %p67 = scmp.eq.s32.totalorder %s9, 1
    %p68 = por %p66, %p67
    %p69 = scmp.ne.s32.totalorder %s61, %s64
    %p70 = scmp.eq.s32.totalorder %s9, 0
    %p71 = por %p69, %p70
    %p72 = scmp.ne.s32.totalorder %s61, %s64
    %p73 = scmp.eq.s32.totalorder %s14, 1
    %p74 = por %p72, %p73
    %p75 = scmp.ne.s32.totalorder %s64, %s65
    %p76 = scmp.eq.s32.totalorder %s14, 0
    %p77 = por %p75, %p76
    %p78 = scmp.ne.s32.totalorder %s64, %s65
    %p79 = scmp.eq.s32.totalorder %s15, 1
    %p80 = por %p78, %p79
    %p82 = scmp.ne.s32.totalorder %s65, %s81
    %p83 = scmp.eq.s32.totalorder %s15, 0
    %p84 = por %p82, %p83
    %s85 = ssub.s32 %s16, %s28
    %p86 = scmp.eq.s32.totalorder %s85, 0
    %s88 = sadd.s32 %s87, 1
    %s89 = scalar_select %p86, %s87, %s88
    %p92 = pneg %p86
    %p93 = scmp.eq.s32.totalorder %s9, 1
    %p94 = por %p92, %p93
    %p95 = scmp.ne.s32.totalorder %s87, %s90
    %p96 = scmp.eq.s32.totalorder %s9, 0
    %p97 = por %p95, %p96
    %p98 = scmp.ne.s32.totalorder %s87, %s90
    %p99 = scmp.eq.s32.totalorder %s14, 1
    %p100 = por %p98, %p99
    %p101 = scmp.ne.s32.totalorder %s90, %s91
    %p102 = scmp.eq.s32.totalorder %s14, 0
    %p103 = por %p101, %p102
    %p104 = scmp.ne.s32.totalorder %s90, %s91
    %p105 = scmp.eq.s32.totalorder %s15, 1
    %p106 = por %p104, %p105
    %p108 = scmp.ne.s32.totalorder %s91, %s107
    %p109 = scmp.eq.s32.totalorder %s15, 0
    %p110 = por %p108, %p109
    %s111 = ssub.s32 %s16, %s28
    %s112 = ssub.s32 %s17, %s24
    %s113 = sor.u32 %s111, %s112
    %p114 = scmp.eq.s32.totalorder %s113, 0
    %s116 = sadd.s32 %s115, 1
    %s117 = scalar_select %p114, %s115, %s116
    %p120 = pneg %p114
    %p121 = scmp.eq.s32.totalorder %s9, 1
    %p122 = por %p120, %p121
    %p123 = scmp.ne.s32.totalorder %s115, %s118
    %p124 = scmp.eq.s32.totalorder %s9, 0
    %p125 = por %p123, %p124
    %p126 = scmp.ne.s32.totalorder %s115, %s118
    %p127 = scmp.eq.s32.totalorder %s14, 1
    %p128 = por %p126, %p127
    %p129 = scmp.ne.s32.totalorder %s118, %s119
    %p130 = scmp.eq.s32.totalorder %s14, 0
    %p131 = por %p129, %p130
    %p132 = scmp.ne.s32.totalorder %s118, %s119
    %p133 = scmp.eq.s32.totalorder %s15, 1
    %p134 = por %p132, %p133
    %p136 = scmp.ne.s32.totalorder %s119, %s135
    %p137 = scmp.eq.s32.totalorder %s15, 0
    %p138 = por %p136, %p137
    %p139 = scmp.le.s32.totalorder 1, %s9
    %p140 = scmp.lt.s32.totalorder %s9, 3
    %p141 = pnand %p139, %p140
    %p142 = pneg %p141
    // Predicated region
    $region9: #{edge_logits_pallas.3} parent=5 // pred_check
      _
    $region10: #{edge_logits_pallas.3} parent=5 // pred_check_branch
      %144 = sbr.rel (%p141) target = $region12
    $region11: #{edge_logits_pallas.3} parent=5 // pred_region
      %s145 = ssub.s32 %s9, 1
    $region12: #{edge_logits_pallas.3} parent=5 // pred_fallthru
      _
    %p146 = scmp.lt.s32.totalorder %s9, 2
    // Predicated region
    $region13: #{edge_logits_pallas.3} parent=5 // pred_check
      %p147 = pneg %p146
    $region14: #{edge_logits_pallas.3} parent=5 // pred_check_branch
      %149 = sbr.rel (%p147) target = $region16
    $region15: #{edge_logits_pallas.3} parent=5 // pred_region
      // Predicated region
      $region17: #{edge_logits_pallas.3} parent=15 // pred_check
        %p150 = pneg %p43
      $region18: #{edge_logits_pallas.3} parent=15 // pred_check_branch
        %152 = sbr.rel (%p150) target = $region20
      $region19: #{edge_logits_pallas.3} parent=15 // pred_region
        %s153 = smul.u32 8, %s17
        %p154 = scmp.lt.s32.totalorder %s16, 1
        %s155 = scalar_select %p154, %s16, 1
        %p156 = scmp.lt.s32.totalorder %s153, 7
        %s157 = scalar_select %p156, %s153, 7
        %s158 = smul.addr %s155, 8
        %s159 = sadd.s32 %s157, %s158
        %s160 = scalar_lea.vmem %s0, %s159
        %s161 = smul.u32 8, %s17
      $region20: #{edge_logits_pallas.3} parent=15 // pred_fallthru
        _
      // Predicated region
      $region21: #{edge_logits_pallas.3} parent=15 // pred_check
        %p162 = pneg %p71
      $region22: #{edge_logits_pallas.3} parent=15 // pred_check_branch
        %164 = sbr.rel (%p162) target = $region24
      $region23: #{edge_logits_pallas.3} parent=15 // pred_region
        %s165 = smul.u32 8, %s17
        %p166 = scmp.lt.s32.totalorder %s16, 1
        %s167 = scalar_select %p166, %s16, 1
        %p168 = scmp.lt.s32.totalorder %s165, 7
        %s169 = scalar_select %p168, %s165, 7
        %s170 = smul.addr %s167, 8
        %s171 = sadd.s32 %s169, %s170
        %s172 = scalar_lea.vmem %s1, %s171
        %s173 = smul.u32 8, %s17
      $region24: #{edge_logits_pallas.3} parent=15 // pred_fallthru
        _
      // Predicated region
      $region25: #{edge_logits_pallas.3} parent=15 // pred_check
        %p174 = pneg %p97
      $region26: #{edge_logits_pallas.3} parent=15 // pred_check_branch
        %176 = sbr.rel (%p174) target = $region28
      $region27: #{edge_logits_pallas.3} parent=15 // pred_region
        %p177 = scmp.lt.s32.totalorder %s16, 1
        %s178 = scalar_select %p177, %s16, 1
        %s179 = smul.addr %s178, 2
        %s180 = scalar_lea.vmem %s2, %s179
      $region28: #{edge_logits_pallas.3} parent=15 // pred_fallthru
        _
    $region16: #{edge_logits_pallas.3} parent=5 // pred_fallthru
      _
    %p181 = scmp.le.s32.totalorder 1, %s9
    %p182 = scmp.lt.s32.totalorder %s9, 3
    %p183 = pnand %p181, %p182
    %p184 = pneg %p183
    // Predicated region
    $region29: #{edge_logits_pallas.3} parent=5 // pred_check
      _
    $region30: #{edge_logits_pallas.3} parent=5 // pred_check_branch
      %186 = sbr.rel (%p183) target = $region32
    $region31: #{edge_logits_pallas.3} parent=5 // pred_region
      %s187 = ssub.s32 %s9, 1
      %s188 = smul.u32 8, %s19
      %p189 = scmp.lt.s32.totalorder %s18, 1
      %s190 = scalar_select %p189, %s18, 1
      %p191 = scmp.lt.s32.totalorder %s188, 7
      %s192 = scalar_select %p191, %s188, 7
      %s193 = smul.addr %s190, 8
      %s194 = sadd.s32 %s192, %s193
      %s195 = scalar_lea.vmem %s0, %s194
      %p196 = pneg %p49
      %p197 = pneg %p46
      %s198 = smul.u32 8, %s19
      %p199 = scmp.lt.s32.totalorder %s18, 1
      %s200 = scalar_select %p199, %s18, 1
      %p201 = scmp.lt.s32.totalorder %s198, 7
      %s202 = scalar_select %p201, %s198, 7
      %s203 = smul.addr %s200, 8
      %s204 = sadd.s32 %s202, %s203
      %s205 = scalar_lea.vmem %s1, %s204
      %p206 = pneg %p77
      %p207 = pneg %p74
      %p208 = scmp.lt.s32.totalorder %s18, 1
      %s209 = scalar_select %p208, %s18, 1
      %s210 = smul.addr %s209, 2
      %s211 = scalar_lea.vmem %s2, %s210
      %p212 = pneg %p103
      %p213 = pneg %p100
      %p214 = pneg %p131
      %p215 = pneg %p128
      %s216 = smul.u32 8, %s19
      %p217 = scmp.lt.s32.totalorder %s18, 1
      %s218 = scalar_select %p217, %s18, 1
      %p219 = scmp.lt.s32.totalorder %s216, 7
      %s220 = scalar_select %p219, %s216, 7
      %s221 = smul.addr %s218, 8
      %s222 = sadd.s32 %s220, %s221
      %s223 = scalar_lea.vmem %s3, %s222
      %s224 = smul.u32 8, %s19
      %p225 = scmp.lt.s32.totalorder %s18, 1
      %s226 = scalar_select %p225, %s18, 1
      %p227 = scmp.lt.s32.totalorder %s224, 7
      %s228 = scalar_select %p227, %s224, 7
      %s229 = smul.addr %s226, 8
      %s230 = sadd.s32 %s228, %s229
      %s231 = scalar_lea.vmem %s0, %s230
      %s232 = smul.u32 8, %s19
      %s233 = smul.u32 8, %s19
      %p234 = scmp.lt.s32.totalorder %s18, 1
      %s235 = scalar_select %p234, %s18, 1
      %p236 = scmp.lt.s32.totalorder %s233, 7
      %s237 = scalar_select %p236, %s233, 7
      %s238 = smul.addr %s235, 8
      %s239 = sadd.s32 %s237, %s238
      %s240 = scalar_lea.vmem %s1, %s239
      %s241 = smul.u32 8, %s19
      %p242 = scmp.lt.s32.totalorder %s18, 1
      %s243 = scalar_select %p242, %s18, 1
      %s244 = smul.addr %s243, 2
      %s245 = scalar_lea.vmem %s2, %s244
      %s246 = smul.u32 8, %s19
      %p247 = scmp.lt.s32.totalorder %s18, 1
      %s248 = scalar_select %p247, %s18, 1
      %p249 = scmp.lt.s32.totalorder %s246, 7
      %s250 = scalar_select %p249, %s246, 7
      %s251 = smul.addr %s248, 8
      %s252 = sadd.s32 %s250, %s251
      %s253 = scalar_lea.vmem %s3, %s252
      %s254 = smul.u32 8, %s19
      %v255 = vlaneseq
      %v256 = vshrl.u32 %v255, 7
      %v257 = vadd.s32 %v256, 8
      %v258 = vadd.s32 %v256, 16
      %v259 = vadd.s32 %v256, 24
      %v260 = vadd.s32 %v256, 32
      %v261 = vadd.s32 %v256, 40
      %v262 = vadd.s32 %v256, 48
      %v263 = vadd.s32 %v256, 56
      %v264 = vadd.s32 %v256, 64
      %v265 = vadd.s32 %v256, 72
      %v266 = vadd.s32 %v256, 80
      %v267 = vadd.s32 %v256, 88
      %v268 = vadd.s32 %v256, 96
      %v269 = vadd.s32 %v256, 104
      %v270 = vadd.s32 %v256, 112
      %v271 = vadd.s32 %v256, 120
      %v272 = vld [vmem:[%s231] sm:$0xff]
      %v273 = vperm.slane %v272, 0
      %v274 = vperm.slane %v272, 1
      %v275 = vperm.slane %v272, 2
      %v276 = vperm.slane %v272, 3
      %v277 = vperm.slane %v272, 4
      %v278 = vperm.slane %v272, 5
      %v279 = vperm.slane %v272, 6
      %v280 = vperm.slane %v272, 7
      %vm281 = vcmp.eq.s32.totalorder %v256, %v273
      %vm282 = vcmp.eq.s32.totalorder %v256, %v274
      %vm283 = vcmp.eq.s32.totalorder %v256, %v275
      %vm284 = vcmp.eq.s32.totalorder %v256, %v276
      %vm285 = vcmp.eq.s32.totalorder %v256, %v277
      %vm286 = vcmp.eq.s32.totalorder %v256, %v278
      %vm287 = vcmp.eq.s32.totalorder %v256, %v279
      %vm288 = vcmp.eq.s32.totalorder %v256, %v280
      %vm289 = vcmp.eq.s32.totalorder %v257, %v273
      %vm290 = vcmp.eq.s32.totalorder %v257, %v274
      %vm291 = vcmp.eq.s32.totalorder %v257, %v275
      %vm292 = vcmp.eq.s32.totalorder %v257, %v276
      %vm293 = vcmp.eq.s32.totalorder %v257, %v277
      %vm294 = vcmp.eq.s32.totalorder %v257, %v278
      %vm295 = vcmp.eq.s32.totalorder %v257, %v279
      %vm296 = vcmp.eq.s32.totalorder %v257, %v280
      %vm297 = vcmp.eq.s32.totalorder %v258, %v273
      %vm298 = vcmp.eq.s32.totalorder %v258, %v274
      %vm299 = vcmp.eq.s32.totalorder %v258, %v275
      %vm300 = vcmp.eq.s32.totalorder %v258, %v276
      %vm301 = vcmp.eq.s32.totalorder %v258, %v277
      %vm302 = vcmp.eq.s32.totalorder %v258, %v278
      %vm303 = vcmp.eq.s32.totalorder %v258, %v279
      %vm304 = vcmp.eq.s32.totalorder %v258, %v280
      %vm305 = vcmp.eq.s32.totalorder %v259, %v273
      %vm306 = vcmp.eq.s32.totalorder %v259, %v274
      %vm307 = vcmp.eq.s32.totalorder %v259, %v275
      %vm308 = vcmp.eq.s32.totalorder %v259, %v276
      %vm309 = vcmp.eq.s32.totalorder %v259, %v277
      %vm310 = vcmp.eq.s32.totalorder %v259, %v278
      %vm311 = vcmp.eq.s32.totalorder %v259, %v279
      %vm312 = vcmp.eq.s32.totalorder %v259, %v280
      %vm313 = vcmp.eq.s32.totalorder %v260, %v273
      %vm314 = vcmp.eq.s32.totalorder %v260, %v274
      %vm315 = vcmp.eq.s32.totalorder %v260, %v275
      %vm316 = vcmp.eq.s32.totalorder %v260, %v276
      %vm317 = vcmp.eq.s32.totalorder %v260, %v277
      %vm318 = vcmp.eq.s32.totalorder %v260, %v278
      %vm319 = vcmp.eq.s32.totalorder %v260, %v279
      %vm320 = vcmp.eq.s32.totalorder %v260, %v280
      %vm321 = vcmp.eq.s32.totalorder %v261, %v273
      %vm322 = vcmp.eq.s32.totalorder %v261, %v274
      %vm323 = vcmp.eq.s32.totalorder %v261, %v275
      %vm324 = vcmp.eq.s32.totalorder %v261, %v276
      %vm325 = vcmp.eq.s32.totalorder %v261, %v277
      %vm326 = vcmp.eq.s32.totalorder %v261, %v278
      %vm327 = vcmp.eq.s32.totalorder %v261, %v279
      %vm328 = vcmp.eq.s32.totalorder %v261, %v280
      %vm329 = vcmp.eq.s32.totalorder %v262, %v273
      %vm330 = vcmp.eq.s32.totalorder %v262, %v274
      %vm331 = vcmp.eq.s32.totalorder %v262, %v275
      %vm332 = vcmp.eq.s32.totalorder %v262, %v276
      %vm333 = vcmp.eq.s32.totalorder %v262, %v277
      %vm334 = vcmp.eq.s32.totalorder %v262, %v278
      %vm335 = vcmp.eq.s32.totalorder %v262, %v279
      %vm336 = vcmp.eq.s32.totalorder %v262, %v280
      %vm337 = vcmp.eq.s32.totalorder %v263, %v273
      %vm338 = vcmp.eq.s32.totalorder %v263, %v274
      %vm339 = vcmp.eq.s32.totalorder %v263, %v275
      %vm340 = vcmp.eq.s32.totalorder %v263, %v276
      %vm341 = vcmp.eq.s32.totalorder %v263, %v277
      %vm342 = vcmp.eq.s32.totalorder %v263, %v278
      %vm343 = vcmp.eq.s32.totalorder %v263, %v279
      %vm344 = vcmp.eq.s32.totalorder %v263, %v280
      %vm345 = vcmp.eq.s32.totalorder %v264, %v273
      %vm346 = vcmp.eq.s32.totalorder %v264, %v274
      %vm347 = vcmp.eq.s32.totalorder %v264, %v275
      %vm348 = vcmp.eq.s32.totalorder %v264, %v276
      %vm349 = vcmp.eq.s32.totalorder %v264, %v277
      %vm350 = vcmp.eq.s32.totalorder %v264, %v278
      %vm351 = vcmp.eq.s32.totalorder %v264, %v279
      %vm352 = vcmp.eq.s32.totalorder %v264, %v280
      %vm353 = vcmp.eq.s32.totalorder %v265, %v273
      %vm354 = vcmp.eq.s32.totalorder %v265, %v274
      %vm355 = vcmp.eq.s32.totalorder %v265, %v275
      %vm356 = vcmp.eq.s32.totalorder %v265, %v276
      %vm357 = vcmp.eq.s32.totalorder %v265, %v277
      %vm358 = vcmp.eq.s32.totalorder %v265, %v278
      %vm359 = vcmp.eq.s32.totalorder %v265, %v279
      %vm360 = vcmp.eq.s32.totalorder %v265, %v280
      %vm361 = vcmp.eq.s32.totalorder %v266, %v273
      %vm362 = vcmp.eq.s32.totalorder %v266, %v274
      %vm363 = vcmp.eq.s32.totalorder %v266, %v275
      %vm364 = vcmp.eq.s32.totalorder %v266, %v276
      %vm365 = vcmp.eq.s32.totalorder %v266, %v277
      %vm366 = vcmp.eq.s32.totalorder %v266, %v278
      %vm367 = vcmp.eq.s32.totalorder %v266, %v279
      %vm368 = vcmp.eq.s32.totalorder %v266, %v280
      %vm369 = vcmp.eq.s32.totalorder %v267, %v273
      %vm370 = vcmp.eq.s32.totalorder %v267, %v274
      %vm371 = vcmp.eq.s32.totalorder %v267, %v275
      %vm372 = vcmp.eq.s32.totalorder %v267, %v276
      %vm373 = vcmp.eq.s32.totalorder %v267, %v277
      %vm374 = vcmp.eq.s32.totalorder %v267, %v278
      %vm375 = vcmp.eq.s32.totalorder %v267, %v279
      %vm376 = vcmp.eq.s32.totalorder %v267, %v280
      %vm377 = vcmp.eq.s32.totalorder %v268, %v273
      %vm378 = vcmp.eq.s32.totalorder %v268, %v274
      %vm379 = vcmp.eq.s32.totalorder %v268, %v275
      %vm380 = vcmp.eq.s32.totalorder %v268, %v276
      %vm381 = vcmp.eq.s32.totalorder %v268, %v277
      %vm382 = vcmp.eq.s32.totalorder %v268, %v278
      %vm383 = vcmp.eq.s32.totalorder %v268, %v279
      %vm384 = vcmp.eq.s32.totalorder %v268, %v280
      %vm385 = vcmp.eq.s32.totalorder %v269, %v273
      %vm386 = vcmp.eq.s32.totalorder %v269, %v274
      %vm387 = vcmp.eq.s32.totalorder %v269, %v275
      %vm388 = vcmp.eq.s32.totalorder %v269, %v276
      %vm389 = vcmp.eq.s32.totalorder %v269, %v277
      %vm390 = vcmp.eq.s32.totalorder %v269, %v278
      %vm391 = vcmp.eq.s32.totalorder %v269, %v279
      %vm392 = vcmp.eq.s32.totalorder %v269, %v280
      %vm393 = vcmp.eq.s32.totalorder %v270, %v273
      %vm394 = vcmp.eq.s32.totalorder %v270, %v274
      %vm395 = vcmp.eq.s32.totalorder %v270, %v275
      %vm396 = vcmp.eq.s32.totalorder %v270, %v276
      %vm397 = vcmp.eq.s32.totalorder %v270, %v277
      %vm398 = vcmp.eq.s32.totalorder %v270, %v278
      %vm399 = vcmp.eq.s32.totalorder %v270, %v279
      %vm400 = vcmp.eq.s32.totalorder %v270, %v280
      %vm401 = vcmp.eq.s32.totalorder %v271, %v273
      %vm402 = vcmp.eq.s32.totalorder %v271, %v274
      %vm403 = vcmp.eq.s32.totalorder %v271, %v275
      %vm404 = vcmp.eq.s32.totalorder %v271, %v276
      %vm405 = vcmp.eq.s32.totalorder %v271, %v277
      %vm406 = vcmp.eq.s32.totalorder %v271, %v278
      %vm407 = vcmp.eq.s32.totalorder %v271, %v279
      %vm408 = vcmp.eq.s32.totalorder %v271, %v280
      %v409 = vsel %vm281, 1, 0
      %v410 = vsel %vm282, 1, 0
      %v411 = vsel %vm283, 1, 0
      %v412 = vsel %vm284, 1, 0
      %v413 = vsel %vm285, 1, 0
      %v414 = vsel %vm286, 1, 0
      %v415 = vsel %vm287, 1, 0
      %v416 = vsel %vm288, 1, 0
      %v417 = vsel %vm289, 1, 0
      %v418 = vsel %vm290, 1, 0
      %v419 = vsel %vm291, 1, 0
      %v420 = vsel %vm292, 1, 0
      %v421 = vsel %vm293, 1, 0
      %v422 = vsel %vm294, 1, 0
      %v423 = vsel %vm295, 1, 0
      %v424 = vsel %vm296, 1, 0
      %v425 = vsel %vm297, 1, 0
      %v426 = vsel %vm298, 1, 0
      %v427 = vsel %vm299, 1, 0
      %v428 = vsel %vm300, 1, 0
      %v429 = vsel %vm301, 1, 0
      %v430 = vsel %vm302, 1, 0
      %v431 = vsel %vm303, 1, 0
      %v432 = vsel %vm304, 1, 0
      %v433 = vsel %vm305, 1, 0
      %v434 = vsel %vm306, 1, 0
      %v435 = vsel %vm307, 1, 0
      %v436 = vsel %vm308, 1, 0
      %v437 = vsel %vm309, 1, 0
      %v438 = vsel %vm310, 1, 0
      %v439 = vsel %vm311, 1, 0
      %v440 = vsel %vm312, 1, 0
      %v441 = vsel %vm313, 1, 0
      %v442 = vsel %vm314, 1, 0
      %v443 = vsel %vm315, 1, 0
      %v444 = vsel %vm316, 1, 0
      %v445 = vsel %vm317, 1, 0
      %v446 = vsel %vm318, 1, 0
      %v447 = vsel %vm319, 1, 0
      %v448 = vsel %vm320, 1, 0
      %v449 = vsel %vm321, 1, 0
      %v450 = vsel %vm322, 1, 0
      %v451 = vsel %vm323, 1, 0
      %v452 = vsel %vm324, 1, 0
      %v453 = vsel %vm325, 1, 0
      %v454 = vsel %vm326, 1, 0
      %v455 = vsel %vm327, 1, 0
      %v456 = vsel %vm328, 1, 0
      %v457 = vsel %vm329, 1, 0
      %v458 = vsel %vm330, 1, 0
      %v459 = vsel %vm331, 1, 0
      %v460 = vsel %vm332, 1, 0
      %v461 = vsel %vm333, 1, 0
      %v462 = vsel %vm334, 1, 0
      %v463 = vsel %vm335, 1, 0
      %v464 = vsel %vm336, 1, 0
      %v465 = vsel %vm337, 1, 0
      %v466 = vsel %vm338, 1, 0
      %v467 = vsel %vm339, 1, 0
      %v468 = vsel %vm340, 1, 0
      %v469 = vsel %vm341, 1, 0
      %v470 = vsel %vm342, 1, 0
      %v471 = vsel %vm343, 1, 0
      %v472 = vsel %vm344, 1, 0
      %v473 = vsel %vm345, 1, 0
      %v474 = vsel %vm346, 1, 0
      %v475 = vsel %vm347, 1, 0
      %v476 = vsel %vm348, 1, 0
      %v477 = vsel %vm349, 1, 0
      %v478 = vsel %vm350, 1, 0
      %v479 = vsel %vm351, 1, 0
      %v480 = vsel %vm352, 1, 0
      %v481 = vsel %vm353, 1, 0
      %v482 = vsel %vm354, 1, 0
      %v483 = vsel %vm355, 1, 0
      %v484 = vsel %vm356, 1, 0
      %v485 = vsel %vm357, 1, 0
      %v486 = vsel %vm358, 1, 0
      %v487 = vsel %vm359, 1, 0
      %v488 = vsel %vm360, 1, 0
      %v489 = vsel %vm361, 1, 0
      %v490 = vsel %vm362, 1, 0
      %v491 = vsel %vm363, 1, 0
      %v492 = vsel %vm364, 1, 0
      %v493 = vsel %vm365, 1, 0
      %v494 = vsel %vm366, 1, 0
      %v495 = vsel %vm367, 1, 0
      %v496 = vsel %vm368, 1, 0
      %v497 = vsel %vm369, 1, 0
      %v498 = vsel %vm370, 1, 0
      %v499 = vsel %vm371, 1, 0
      %v500 = vsel %vm372, 1, 0
      %v501 = vsel %vm373, 1, 0
      %v502 = vsel %vm374, 1, 0
      %v503 = vsel %vm375, 1, 0
      %v504 = vsel %vm376, 1, 0
      %v505 = vsel %vm377, 1, 0
      %v506 = vsel %vm378, 1, 0
      %v507 = vsel %vm379, 1, 0
      %v508 = vsel %vm380, 1, 0
      %v509 = vsel %vm381, 1, 0
      %v510 = vsel %vm382, 1, 0
      %v511 = vsel %vm383, 1, 0
      %v512 = vsel %vm384, 1, 0
      %v513 = vsel %vm385, 1, 0
      %v514 = vsel %vm386, 1, 0
      %v515 = vsel %vm387, 1, 0
      %v516 = vsel %vm388, 1, 0
      %v517 = vsel %vm389, 1, 0
      %v518 = vsel %vm390, 1, 0
      %v519 = vsel %vm391, 1, 0
      %v520 = vsel %vm392, 1, 0
      %v521 = vsel %vm393, 1, 0
      %v522 = vsel %vm394, 1, 0
      %v523 = vsel %vm395, 1, 0
      %v524 = vsel %vm396, 1, 0
      %v525 = vsel %vm397, 1, 0
      %v526 = vsel %vm398, 1, 0
      %v527 = vsel %vm399, 1, 0
      %v528 = vsel %vm400, 1, 0
      %v529 = vsel %vm401, 1, 0
      %v530 = vsel %vm402, 1, 0
      %v531 = vsel %vm403, 1, 0
      %v532 = vsel %vm404, 1, 0
      %v533 = vsel %vm405, 1, 0
      %v534 = vsel %vm406, 1, 0
      %v535 = vsel %vm407, 1, 0
      %v536 = vsel %vm408, 1, 0
      %v537 = vcvt.s32.f32 %v409
      %v538 = vcvt.s32.f32 %v410
      %v539 = vcvt.s32.f32 %v411
      %v540 = vcvt.s32.f32 %v412
      %v541 = vcvt.s32.f32 %v413
      %v542 = vcvt.s32.f32 %v414
      %v543 = vcvt.s32.f32 %v415
      %v544 = vcvt.s32.f32 %v416
      %v545 = vcvt.s32.f32 %v417
      %v546 = vcvt.s32.f32 %v418
      %v547 = vcvt.s32.f32 %v419
      %v548 = vcvt.s32.f32 %v420
      %v549 = vcvt.s32.f32 %v421
      %v550 = vcvt.s32.f32 %v422
      %v551 = vcvt.s32.f32 %v423
      %v552 = vcvt.s32.f32 %v424
      %v553 = vcvt.s32.f32 %v425
      %v554 = vcvt.s32.f32 %v426
      %v555 = vcvt.s32.f32 %v427
      %v556 = vcvt.s32.f32 %v428
      %v557 = vcvt.s32.f32 %v429
      %v558 = vcvt.s32.f32 %v430
      %v559 = vcvt.s32.f32 %v431
      %v560 = vcvt.s32.f32 %v432
      %v561 = vcvt.s32.f32 %v433
      %v562 = vcvt.s32.f32 %v434
      %v563 = vcvt.s32.f32 %v435
      %v564 = vcvt.s32.f32 %v436
      %v565 = vcvt.s32.f32 %v437
      %v566 = vcvt.s32.f32 %v438
      %v567 = vcvt.s32.f32 %v439
      %v568 = vcvt.s32.f32 %v440
      %v569 = vcvt.s32.f32 %v441
      %v570 = vcvt.s32.f32 %v442
      %v571 = vcvt.s32.f32 %v443
      %v572 = vcvt.s32.f32 %v444
      %v573 = vcvt.s32.f32 %v445
      %v574 = vcvt.s32.f32 %v446
      %v575 = vcvt.s32.f32 %v447
      %v576 = vcvt.s32.f32 %v448
      %v577 = vcvt.s32.f32 %v449
      %v578 = vcvt.s32.f32 %v450
      %v579 = vcvt.s32.f32 %v451
      %v580 = vcvt.s32.f32 %v452
      %v581 = vcvt.s32.f32 %v453
      %v582 = vcvt.s32.f32 %v454
      %v583 = vcvt.s32.f32 %v455
      %v584 = vcvt.s32.f32 %v456
      %v585 = vcvt.s32.f32 %v457
      %v586 = vcvt.s32.f32 %v458
      %v587 = vcvt.s32.f32 %v459
      %v588 = vcvt.s32.f32 %v460
      %v589 = vcvt.s32.f32 %v461
      %v590 = vcvt.s32.f32 %v462
      %v591 = vcvt.s32.f32 %v463
      %v592 = vcvt.s32.f32 %v464
      %v593 = vcvt.s32.f32 %v465
      %v594 = vcvt.s32.f32 %v466
      %v595 = vcvt.s32.f32 %v467
      %v596 = vcvt.s32.f32 %v468
      %v597 = vcvt.s32.f32 %v469
      %v598 = vcvt.s32.f32 %v470
      %v599 = vcvt.s32.f32 %v471
      %v600 = vcvt.s32.f32 %v472
      %v601 = vcvt.s32.f32 %v473
      %v602 = vcvt.s32.f32 %v474
      %v603 = vcvt.s32.f32 %v475
      %v604 = vcvt.s32.f32 %v476
      %v605 = vcvt.s32.f32 %v477
      %v606 = vcvt.s32.f32 %v478
      %v607 = vcvt.s32.f32 %v479
      %v608 = vcvt.s32.f32 %v480
      %v609 = vcvt.s32.f32 %v481
      %v610 = vcvt.s32.f32 %v482
      %v611 = vcvt.s32.f32 %v483
      %v612 = vcvt.s32.f32 %v484
      %v613 = vcvt.s32.f32 %v485
      %v614 = vcvt.s32.f32 %v486
      %v615 = vcvt.s32.f32 %v487
      %v616 = vcvt.s32.f32 %v488
      %v617 = vcvt.s32.f32 %v489
      %v618 = vcvt.s32.f32 %v490
      %v619 = vcvt.s32.f32 %v491
      %v620 = vcvt.s32.f32 %v492
      %v621 = vcvt.s32.f32 %v493
      %v622 = vcvt.s32.f32 %v494
      %v623 = vcvt.s32.f32 %v495
      %v624 = vcvt.s32.f32 %v496
      %v625 = vcvt.s32.f32 %v497
      %v626 = vcvt.s32.f32 %v498
      %v627 = vcvt.s32.f32 %v499
      %v628 = vcvt.s32.f32 %v500
      %v629 = vcvt.s32.f32 %v501
      %v630 = vcvt.s32.f32 %v502
      %v631 = vcvt.s32.f32 %v503
      %v632 = vcvt.s32.f32 %v504
      %v633 = vcvt.s32.f32 %v505
      %v634 = vcvt.s32.f32 %v506
      %v635 = vcvt.s32.f32 %v507
      %v636 = vcvt.s32.f32 %v508
      %v637 = vcvt.s32.f32 %v509
      %v638 = vcvt.s32.f32 %v510
      %v639 = vcvt.s32.f32 %v511
      %v640 = vcvt.s32.f32 %v512
      %v641 = vcvt.s32.f32 %v513
      %v642 = vcvt.s32.f32 %v514
      %v643 = vcvt.s32.f32 %v515
      %v644 = vcvt.s32.f32 %v516
      %v645 = vcvt.s32.f32 %v517
      %v646 = vcvt.s32.f32 %v518
      %v647 = vcvt.s32.f32 %v519
      %v648 = vcvt.s32.f32 %v520
      %v649 = vcvt.s32.f32 %v521
      %v650 = vcvt.s32.f32 %v522
      %v651 = vcvt.s32.f32 %v523
      %v652 = vcvt.s32.f32 %v524
      %v653 = vcvt.s32.f32 %v525
      %v654 = vcvt.s32.f32 %v526
      %v655 = vcvt.s32.f32 %v527
      %v656 = vcvt.s32.f32 %v528
      %v657 = vcvt.s32.f32 %v529
      %v658 = vcvt.s32.f32 %v530
      %v659 = vcvt.s32.f32 %v531
      %v660 = vcvt.s32.f32 %v532
      %v661 = vcvt.s32.f32 %v533
      %v662 = vcvt.s32.f32 %v534
      %v663 = vcvt.s32.f32 %v535
      %v664 = vcvt.s32.f32 %v536
      %v665 = vld [vmem:[%s240] sm:$0xff]
      %v666 = vperm.slane %v665, 0
      %v667 = vperm.slane %v665, 1
      %v668 = vperm.slane %v665, 2
      %v669 = vperm.slane %v665, 3
      %v670 = vperm.slane %v665, 4
      %v671 = vperm.slane %v665, 5
      %v672 = vperm.slane %v665, 6
      %v673 = vperm.slane %v665, 7
      %vm674 = vcmp.eq.s32.totalorder %v256, %v666
      %vm675 = vcmp.eq.s32.totalorder %v256, %v667
      %vm676 = vcmp.eq.s32.totalorder %v256, %v668
      %vm677 = vcmp.eq.s32.totalorder %v256, %v669
      %vm678 = vcmp.eq.s32.totalorder %v256, %v670
      %vm679 = vcmp.eq.s32.totalorder %v256, %v671
      %vm680 = vcmp.eq.s32.totalorder %v256, %v672
      %vm681 = vcmp.eq.s32.totalorder %v256, %v673
      %vm682 = vcmp.eq.s32.totalorder %v257, %v666
      %vm683 = vcmp.eq.s32.totalorder %v257, %v667
      %vm684 = vcmp.eq.s32.totalorder %v257, %v668
      %vm685 = vcmp.eq.s32.totalorder %v257, %v669
      %vm686 = vcmp.eq.s32.totalorder %v257, %v670
      %vm687 = vcmp.eq.s32.totalorder %v257, %v671
      %vm688 = vcmp.eq.s32.totalorder %v257, %v672
      %vm689 = vcmp.eq.s32.totalorder %v257, %v673
      %vm690 = vcmp.eq.s32.totalorder %v258, %v666
      %vm691 = vcmp.eq.s32.totalorder %v258, %v667
      %vm692 = vcmp.eq.s32.totalorder %v258, %v668
      %vm693 = vcmp.eq.s32.totalorder %v258, %v669
      %vm694 = vcmp.eq.s32.totalorder %v258, %v670
      %vm695 = vcmp.eq.s32.totalorder %v258, %v671
      %vm696 = vcmp.eq.s32.totalorder %v258, %v672
      %vm697 = vcmp.eq.s32.totalorder %v258, %v673
      %vm698 = vcmp.eq.s32.totalorder %v259, %v666
      %vm699 = vcmp.eq.s32.totalorder %v259, %v667
      %vm700 = vcmp.eq.s32.totalorder %v259, %v668
      %vm701 = vcmp.eq.s32.totalorder %v259, %v669
      %vm702 = vcmp.eq.s32.totalorder %v259, %v670
      %vm703 = vcmp.eq.s32.totalorder %v259, %v671
      %vm704 = vcmp.eq.s32.totalorder %v259, %v672
      %vm705 = vcmp.eq.s32.totalorder %v259, %v673
      %vm706 = vcmp.eq.s32.totalorder %v260, %v666
      %vm707 = vcmp.eq.s32.totalorder %v260, %v667
      %vm708 = vcmp.eq.s32.totalorder %v260, %v668
      %vm709 = vcmp.eq.s32.totalorder %v260, %v669
      %vm710 = vcmp.eq.s32.totalorder %v260, %v670
      %vm711 = vcmp.eq.s32.totalorder %v260, %v671
      %vm712 = vcmp.eq.s32.totalorder %v260, %v672
      %vm713 = vcmp.eq.s32.totalorder %v260, %v673
      %vm714 = vcmp.eq.s32.totalorder %v261, %v666
      %vm715 = vcmp.eq.s32.totalorder %v261, %v667
      %vm716 = vcmp.eq.s32.totalorder %v261, %v668
      %vm717 = vcmp.eq.s32.totalorder %v261, %v669
      %vm718 = vcmp.eq.s32.totalorder %v261, %v670
      %vm719 = vcmp.eq.s32.totalorder %v261, %v671
      %vm720 = vcmp.eq.s32.totalorder %v261, %v672
      %vm721 = vcmp.eq.s32.totalorder %v261, %v673
      %vm722 = vcmp.eq.s32.totalorder %v262, %v666
      %vm723 = vcmp.eq.s32.totalorder %v262, %v667
      %vm724 = vcmp.eq.s32.totalorder %v262, %v668
      %vm725 = vcmp.eq.s32.totalorder %v262, %v669
      %vm726 = vcmp.eq.s32.totalorder %v262, %v670
      %vm727 = vcmp.eq.s32.totalorder %v262, %v671
      %vm728 = vcmp.eq.s32.totalorder %v262, %v672
      %vm729 = vcmp.eq.s32.totalorder %v262, %v673
      %vm730 = vcmp.eq.s32.totalorder %v263, %v666
      %vm731 = vcmp.eq.s32.totalorder %v263, %v667
      %vm732 = vcmp.eq.s32.totalorder %v263, %v668
      %vm733 = vcmp.eq.s32.totalorder %v263, %v669
      %vm734 = vcmp.eq.s32.totalorder %v263, %v670
      %vm735 = vcmp.eq.s32.totalorder %v263, %v671
      %vm736 = vcmp.eq.s32.totalorder %v263, %v672
      %vm737 = vcmp.eq.s32.totalorder %v263, %v673
      %vm738 = vcmp.eq.s32.totalorder %v264, %v666
      %vm739 = vcmp.eq.s32.totalorder %v264, %v667
      %vm740 = vcmp.eq.s32.totalorder %v264, %v668
      %vm741 = vcmp.eq.s32.totalorder %v264, %v669
      %vm742 = vcmp.eq.s32.totalorder %v264, %v670
      %vm743 = vcmp.eq.s32.totalorder %v264, %v671
      %vm744 = vcmp.eq.s32.totalorder %v264, %v672
      %vm745 = vcmp.eq.s32.totalorder %v264, %v673
      %vm746 = vcmp.eq.s32.totalorder %v265, %v666
      %vm747 = vcmp.eq.s32.totalorder %v265, %v667
      %vm748 = vcmp.eq.s32.totalorder %v265, %v668
      %vm749 = vcmp.eq.s32.totalorder %v265, %v669
      %vm750 = vcmp.eq.s32.totalorder %v265, %v670
      %vm751 = vcmp.eq.s32.totalorder %v265, %v671
      %vm752 = vcmp.eq.s32.totalorder %v265, %v672
      %vm753 = vcmp.eq.s32.totalorder %v265, %v673
      %vm754 = vcmp.eq.s32.totalorder %v266, %v666
      %vm755 = vcmp.eq.s32.totalorder %v266, %v667
      %vm756 = vcmp.eq.s32.totalorder %v266, %v668
      %vm757 = vcmp.eq.s32.totalorder %v266, %v669
      %vm758 = vcmp.eq.s32.totalorder %v266, %v670
      %vm759 = vcmp.eq.s32.totalorder %v266, %v671
      %vm760 = vcmp.eq.s32.totalorder %v266, %v672
      %vm761 = vcmp.eq.s32.totalorder %v266, %v673
      %vm762 = vcmp.eq.s32.totalorder %v267, %v666
      %vm763 = vcmp.eq.s32.totalorder %v267, %v667
      %vm764 = vcmp.eq.s32.totalorder %v267, %v668
      %vm765 = vcmp.eq.s32.totalorder %v267, %v669
      %vm766 = vcmp.eq.s32.totalorder %v267, %v670
      %vm767 = vcmp.eq.s32.totalorder %v267, %v671
      %vm768 = vcmp.eq.s32.totalorder %v267, %v672
      %vm769 = vcmp.eq.s32.totalorder %v267, %v673
      %vm770 = vcmp.eq.s32.totalorder %v268, %v666
      %vm771 = vcmp.eq.s32.totalorder %v268, %v667
      %vm772 = vcmp.eq.s32.totalorder %v268, %v668
      %vm773 = vcmp.eq.s32.totalorder %v268, %v669
      %vm774 = vcmp.eq.s32.totalorder %v268, %v670
      %vm775 = vcmp.eq.s32.totalorder %v268, %v671
      %vm776 = vcmp.eq.s32.totalorder %v268, %v672
      %vm777 = vcmp.eq.s32.totalorder %v268, %v673
      %vm778 = vcmp.eq.s32.totalorder %v269, %v666
      %vm779 = vcmp.eq.s32.totalorder %v269, %v667
      %vm780 = vcmp.eq.s32.totalorder %v269, %v668
      %vm781 = vcmp.eq.s32.totalorder %v269, %v669
      %vm782 = vcmp.eq.s32.totalorder %v269, %v670
      %vm783 = vcmp.eq.s32.totalorder %v269, %v671
      %vm784 = vcmp.eq.s32.totalorder %v269, %v672
      %vm785 = vcmp.eq.s32.totalorder %v269, %v673
      %vm786 = vcmp.eq.s32.totalorder %v270, %v666
      %vm787 = vcmp.eq.s32.totalorder %v270, %v667
      %vm788 = vcmp.eq.s32.totalorder %v270, %v668
      %vm789 = vcmp.eq.s32.totalorder %v270, %v669
      %vm790 = vcmp.eq.s32.totalorder %v270, %v670
      %vm791 = vcmp.eq.s32.totalorder %v270, %v671
      %vm792 = vcmp.eq.s32.totalorder %v270, %v672
      %vm793 = vcmp.eq.s32.totalorder %v270, %v673
      %vm794 = vcmp.eq.s32.totalorder %v271, %v666
      %vm795 = vcmp.eq.s32.totalorder %v271, %v667
      %vm796 = vcmp.eq.s32.totalorder %v271, %v668
      %vm797 = vcmp.eq.s32.totalorder %v271, %v669
      %vm798 = vcmp.eq.s32.totalorder %v271, %v670
      %vm799 = vcmp.eq.s32.totalorder %v271, %v671
      %vm800 = vcmp.eq.s32.totalorder %v271, %v672
      %vm801 = vcmp.eq.s32.totalorder %v271, %v673
      %v802 = vsel %vm674, 1, 0
      %v803 = vsel %vm675, 1, 0
      %v804 = vsel %vm676, 1, 0
      %v805 = vsel %vm677, 1, 0
      %v806 = vsel %vm678, 1, 0
      %v807 = vsel %vm679, 1, 0
      %v808 = vsel %vm680, 1, 0
      %v809 = vsel %vm681, 1, 0
      %v810 = vsel %vm682, 1, 0
      %v811 = vsel %vm683, 1, 0
      %v812 = vsel %vm684, 1, 0
      %v813 = vsel %vm685, 1, 0
      %v814 = vsel %vm686, 1, 0
      %v815 = vsel %vm687, 1, 0
      %v816 = vsel %vm688, 1, 0
      %v817 = vsel %vm689, 1, 0
      %v818 = vsel %vm690, 1, 0
      %v819 = vsel %vm691, 1, 0
      %v820 = vsel %vm692, 1, 0
      %v821 = vsel %vm693, 1, 0
      %v822 = vsel %vm694, 1, 0
      %v823 = vsel %vm695, 1, 0
      %v824 = vsel %vm696, 1, 0
      %v825 = vsel %vm697, 1, 0
      %v826 = vsel %vm698, 1, 0
      %v827 = vsel %vm699, 1, 0
      %v828 = vsel %vm700, 1, 0
      %v829 = vsel %vm701, 1, 0
      %v830 = vsel %vm702, 1, 0
      %v831 = vsel %vm703, 1, 0
      %v832 = vsel %vm704, 1, 0
      %v833 = vsel %vm705, 1, 0
      %v834 = vsel %vm706, 1, 0
      %v835 = vsel %vm707, 1, 0
      %v836 = vsel %vm708, 1, 0
      %v837 = vsel %vm709, 1, 0
      %v838 = vsel %vm710, 1, 0
      %v839 = vsel %vm711, 1, 0
      %v840 = vsel %vm712, 1, 0
      %v841 = vsel %vm713, 1, 0
      %v842 = vsel %vm714, 1, 0
      %v843 = vsel %vm715, 1, 0
      %v844 = vsel %vm716, 1, 0
      %v845 = vsel %vm717, 1, 0
      %v846 = vsel %vm718, 1, 0
      %v847 = vsel %vm719, 1, 0
      %v848 = vsel %vm720, 1, 0
      %v849 = vsel %vm721, 1, 0
      %v850 = vsel %vm722, 1, 0
      %v851 = vsel %vm723, 1, 0
      %v852 = vsel %vm724, 1, 0
      %v853 = vsel %vm725, 1, 0
      %v854 = vsel %vm726, 1, 0
      %v855 = vsel %vm727, 1, 0
      %v856 = vsel %vm728, 1, 0
      %v857 = vsel %vm729, 1, 0
      %v858 = vsel %vm730, 1, 0
      %v859 = vsel %vm731, 1, 0
      %v860 = vsel %vm732, 1, 0
      %v861 = vsel %vm733, 1, 0
      %v862 = vsel %vm734, 1, 0
      %v863 = vsel %vm735, 1, 0
      %v864 = vsel %vm736, 1, 0
      %v865 = vsel %vm737, 1, 0
      %v866 = vsel %vm738, 1, 0
      %v867 = vsel %vm739, 1, 0
      %v868 = vsel %vm740, 1, 0
      %v869 = vsel %vm741, 1, 0
      %v870 = vsel %vm742, 1, 0
      %v871 = vsel %vm743, 1, 0
      %v872 = vsel %vm744, 1, 0
      %v873 = vsel %vm745, 1, 0
      %v874 = vsel %vm746, 1, 0
      %v875 = vsel %vm747, 1, 0
      %v876 = vsel %vm748, 1, 0
      %v877 = vsel %vm749, 1, 0
      %v878 = vsel %vm750, 1, 0
      %v879 = vsel %vm751, 1, 0
      %v880 = vsel %vm752, 1, 0
      %v881 = vsel %vm753, 1, 0
      %v882 = vsel %vm754, 1, 0
      %v883 = vsel %vm755, 1, 0
      %v884 = vsel %vm756, 1, 0
      %v885 = vsel %vm757, 1, 0
      %v886 = vsel %vm758, 1, 0
      %v887 = vsel %vm759, 1, 0
      %v888 = vsel %vm760, 1, 0
      %v889 = vsel %vm761, 1, 0
      %v890 = vsel %vm762, 1, 0
      %v891 = vsel %vm763, 1, 0
      %v892 = vsel %vm764, 1, 0
      %v893 = vsel %vm765, 1, 0
      %v894 = vsel %vm766, 1, 0
      %v895 = vsel %vm767, 1, 0
      %v896 = vsel %vm768, 1, 0
      %v897 = vsel %vm769, 1, 0
      %v898 = vsel %vm770, 1, 0
      %v899 = vsel %vm771, 1, 0
      %v900 = vsel %vm772, 1, 0
      %v901 = vsel %vm773, 1, 0
      %v902 = vsel %vm774, 1, 0
      %v903 = vsel %vm775, 1, 0
      %v904 = vsel %vm776, 1, 0
      %v905 = vsel %vm777, 1, 0
      %v906 = vsel %vm778, 1, 0
      %v907 = vsel %vm779, 1, 0
      %v908 = vsel %vm780, 1, 0
      %v909 = vsel %vm781, 1, 0
      %v910 = vsel %vm782, 1, 0
      %v911 = vsel %vm783, 1, 0
      %v912 = vsel %vm784, 1, 0
      %v913 = vsel %vm785, 1, 0
      %v914 = vsel %vm786, 1, 0
      %v915 = vsel %vm787, 1, 0
      %v916 = vsel %vm788, 1, 0
      %v917 = vsel %vm789, 1, 0
      %v918 = vsel %vm790, 1, 0
      %v919 = vsel %vm791, 1, 0
      %v920 = vsel %vm792, 1, 0
      %v921 = vsel %vm793, 1, 0
      %v922 = vsel %vm794, 1, 0
      %v923 = vsel %vm795, 1, 0
      %v924 = vsel %vm796, 1, 0
      %v925 = vsel %vm797, 1, 0
      %v926 = vsel %vm798, 1, 0
      %v927 = vsel %vm799, 1, 0
      %v928 = vsel %vm800, 1, 0
      %v929 = vsel %vm801, 1, 0
      %v930 = vcvt.s32.f32 %v802
      %v931 = vcvt.s32.f32 %v803
      %v932 = vcvt.s32.f32 %v804
      %v933 = vcvt.s32.f32 %v805
      %v934 = vcvt.s32.f32 %v806
      %v935 = vcvt.s32.f32 %v807
      %v936 = vcvt.s32.f32 %v808
      %v937 = vcvt.s32.f32 %v809
      %v938 = vcvt.s32.f32 %v810
      %v939 = vcvt.s32.f32 %v811
      %v940 = vcvt.s32.f32 %v812
      %v941 = vcvt.s32.f32 %v813
      %v942 = vcvt.s32.f32 %v814
      %v943 = vcvt.s32.f32 %v815
      %v944 = vcvt.s32.f32 %v816
      %v945 = vcvt.s32.f32 %v817
      %v946 = vcvt.s32.f32 %v818
      %v947 = vcvt.s32.f32 %v819
      %v948 = vcvt.s32.f32 %v820
      %v949 = vcvt.s32.f32 %v821
      %v950 = vcvt.s32.f32 %v822
      %v951 = vcvt.s32.f32 %v823
      %v952 = vcvt.s32.f32 %v824
      %v953 = vcvt.s32.f32 %v825
      %v954 = vcvt.s32.f32 %v826
      %v955 = vcvt.s32.f32 %v827
      %v956 = vcvt.s32.f32 %v828
      %v957 = vcvt.s32.f32 %v829
      %v958 = vcvt.s32.f32 %v830
      %v959 = vcvt.s32.f32 %v831
      %v960 = vcvt.s32.f32 %v832
      %v961 = vcvt.s32.f32 %v833
      %v962 = vcvt.s32.f32 %v834
      %v963 = vcvt.s32.f32 %v835
      %v964 = vcvt.s32.f32 %v836
      %v965 = vcvt.s32.f32 %v837
      %v966 = vcvt.s32.f32 %v838
      %v967 = vcvt.s32.f32 %v839
      %v968 = vcvt.s32.f32 %v840
      %v969 = vcvt.s32.f32 %v841
      %v970 = vcvt.s32.f32 %v842
      %v971 = vcvt.s32.f32 %v843
      %v972 = vcvt.s32.f32 %v844
      %v973 = vcvt.s32.f32 %v845
      %v974 = vcvt.s32.f32 %v846
      %v975 = vcvt.s32.f32 %v847
      %v976 = vcvt.s32.f32 %v848
      %v977 = vcvt.s32.f32 %v849
      %v978 = vcvt.s32.f32 %v850
      %v979 = vcvt.s32.f32 %v851
      %v980 = vcvt.s32.f32 %v852
      %v981 = vcvt.s32.f32 %v853
      %v982 = vcvt.s32.f32 %v854
      %v983 = vcvt.s32.f32 %v855
      %v984 = vcvt.s32.f32 %v856
      %v985 = vcvt.s32.f32 %v857
      %v986 = vcvt.s32.f32 %v858
      %v987 = vcvt.s32.f32 %v859
      %v988 = vcvt.s32.f32 %v860
      %v989 = vcvt.s32.f32 %v861
      %v990 = vcvt.s32.f32 %v862
      %v991 = vcvt.s32.f32 %v863
      %v992 = vcvt.s32.f32 %v864
      %v993 = vcvt.s32.f32 %v865
      %v994 = vcvt.s32.f32 %v866
      %v995 = vcvt.s32.f32 %v867
      %v996 = vcvt.s32.f32 %v868
      %v997 = vcvt.s32.f32 %v869
      %v998 = vcvt.s32.f32 %v870
      %v999 = vcvt.s32.f32 %v871
      %v1000 = vcvt.s32.f32 %v872
      %v1001 = vcvt.s32.f32 %v873
      %v1002 = vcvt.s32.f32 %v874
      %v1003 = vcvt.s32.f32 %v875
      %v1004 = vcvt.s32.f32 %v876
      %v1005 = vcvt.s32.f32 %v877
      %v1006 = vcvt.s32.f32 %v878
      %v1007 = vcvt.s32.f32 %v879
      %v1008 = vcvt.s32.f32 %v880
      %v1009 = vcvt.s32.f32 %v881
      %v1010 = vcvt.s32.f32 %v882
      %v1011 = vcvt.s32.f32 %v883
      %v1012 = vcvt.s32.f32 %v884
      %v1013 = vcvt.s32.f32 %v885
      %v1014 = vcvt.s32.f32 %v886
      %v1015 = vcvt.s32.f32 %v887
      %v1016 = vcvt.s32.f32 %v888
      %v1017 = vcvt.s32.f32 %v889
      %v1018 = vcvt.s32.f32 %v890
      %v1019 = vcvt.s32.f32 %v891
      %v1020 = vcvt.s32.f32 %v892
      %v1021 = vcvt.s32.f32 %v893
      %v1022 = vcvt.s32.f32 %v894
      %v1023 = vcvt.s32.f32 %v895
      %v1024 = vcvt.s32.f32 %v896
      %v1025 = vcvt.s32.f32 %v897
      %v1026 = vcvt.s32.f32 %v898
      %v1027 = vcvt.s32.f32 %v899
      %v1028 = vcvt.s32.f32 %v900
      %v1029 = vcvt.s32.f32 %v901
      %v1030 = vcvt.s32.f32 %v902
      %v1031 = vcvt.s32.f32 %v903
      %v1032 = vcvt.s32.f32 %v904
      %v1033 = vcvt.s32.f32 %v905
      %v1034 = vcvt.s32.f32 %v906
      %v1035 = vcvt.s32.f32 %v907
      %v1036 = vcvt.s32.f32 %v908
      %v1037 = vcvt.s32.f32 %v909
      %v1038 = vcvt.s32.f32 %v910
      %v1039 = vcvt.s32.f32 %v911
      %v1040 = vcvt.s32.f32 %v912
      %v1041 = vcvt.s32.f32 %v913
      %v1042 = vcvt.s32.f32 %v914
      %v1043 = vcvt.s32.f32 %v915
      %v1044 = vcvt.s32.f32 %v916
      %v1045 = vcvt.s32.f32 %v917
      %v1046 = vcvt.s32.f32 %v918
      %v1047 = vcvt.s32.f32 %v919
      %v1048 = vcvt.s32.f32 %v920
      %v1049 = vcvt.s32.f32 %v921
      %v1050 = vcvt.s32.f32 %v922
      %v1051 = vcvt.s32.f32 %v923
      %v1052 = vcvt.s32.f32 %v924
      %v1053 = vcvt.s32.f32 %v925
      %v1054 = vcvt.s32.f32 %v926
      %v1055 = vcvt.s32.f32 %v927
      %v1056 = vcvt.s32.f32 %v928
      %v1057 = vcvt.s32.f32 %v929
      %v1058 = vld [vmem:[%s245] sm:$0x3]
      %v1060 = vrot.slane %v1058, 1
      %1062 = vmatpush.msra.mxu0 %v1050
      %1063 = vmatpush.msra.mxu0 %v1042
      %1064 = vmatpush.msra.mxu0 %v1034
      %1065 = vmatpush.msra.mxu0 %v1026
      %1066 = vmatpush.msra.mxu0 %v1018
      %1067 = vmatpush.msra.mxu0 %v1010
      %1068 = vmatpush.msra.mxu0 %v1002
      %1069 = vmatpush.msra.mxu0 %v994
      %1070 = vmatpush.msra.mxu0 %v986
      %1071 = vmatpush.msra.mxu0 %v978
      %1072 = vmatpush.msra.mxu0 %v970
      %1073 = vmatpush.msra.mxu0 %v962
      %1074 = vmatpush.msra.mxu0 %v954
      %1075 = vmatpush.msra.mxu0 %v946
      %1076 = vmatpush.msra.mxu0 %v938
      %1077 = vmatpush.msra.mxu0 %v930
      %1078 = vmatmul.f32.gmra.mxu0 %v1060
      %v1079 = vpop.f32.mrf.mxu0
      %v1080 = vadd.f32 0.0, %v1079
      %1081 = vdwg.mxu0
      %1082 = vmatpush.msra.mxu0 %v1051
      %1083 = vmatpush.msra.mxu0 %v1043
      %1084 = vmatpush.msra.mxu0 %v1035
      %1085 = vmatpush.msra.mxu0 %v1027
      %1086 = vmatpush.msra.mxu0 %v1019
      %1087 = vmatpush.msra.mxu0 %v1011
      %1088 = vmatpush.msra.mxu0 %v1003
      %1089 = vmatpush.msra.mxu0 %v995
      %1090 = vmatpush.msra.mxu0 %v987
      %1091 = vmatpush.msra.mxu0 %v979
      %1092 = vmatpush.msra.mxu0 %v971
      %1093 = vmatpush.msra.mxu0 %v963
      %1094 = vmatpush.msra.mxu0 %v955
      %1095 = vmatpush.msra.mxu0 %v947
      %1096 = vmatpush.msra.mxu0 %v939
      %1097 = vmatpush.msra.mxu0 %v931
      %1098 = vmatmul.f32.gmra.mxu0 %v1060
      %v1099 = vpop.f32.mrf.mxu0
      %v1100 = vadd.f32 0.0, %v1099
      %1101 = vdwg.mxu0
      %1102 = vmatpush.msra.mxu0 %v1052
      %1103 = vmatpush.msra.mxu0 %v1044
      %1104 = vmatpush.msra.mxu0 %v1036
      %1105 = vmatpush.msra.mxu0 %v1028
      %1106 = vmatpush.msra.mxu0 %v1020
      %1107 = vmatpush.msra.mxu0 %v1012
      %1108 = vmatpush.msra.mxu0 %v1004
      %1109 = vmatpush.msra.mxu0 %v996
      %1110 = vmatpush.msra.mxu0 %v988
      %1111 = vmatpush.msra.mxu0 %v980
      %1112 = vmatpush.msra.mxu0 %v972
      %1113 = vmatpush.msra.mxu0 %v964
      %1114 = vmatpush.msra.mxu0 %v956
      %1115 = vmatpush.msra.mxu0 %v948
      %1116 = vmatpush.msra.mxu0 %v940
      %1117 = vmatpush.msra.mxu0 %v932
      %1118 = vmatmul.f32.gmra.mxu0 %v1060
      %v1119 = vpop.f32.mrf.mxu0
      %v1120 = vadd.f32 0.0, %v1119
      %1121 = vdwg.mxu0
      %1122 = vmatpush.msra.mxu0 %v1053
      %1123 = vmatpush.msra.mxu0 %v1045
      %1124 = vmatpush.msra.mxu0 %v1037
      %1125 = vmatpush.msra.mxu0 %v1029
      %1126 = vmatpush.msra.mxu0 %v1021
      %1127 = vmatpush.msra.mxu0 %v1013
      %1128 = vmatpush.msra.mxu0 %v1005
      %1129 = vmatpush.msra.mxu0 %v997
      %1130 = vmatpush.msra.mxu0 %v989
      %1131 = vmatpush.msra.mxu0 %v981
      %1132 = vmatpush.msra.mxu0 %v973
      %1133 = vmatpush.msra.mxu0 %v965
      %1134 = vmatpush.msra.mxu0 %v957
      %1135 = vmatpush.msra.mxu0 %v949
      %1136 = vmatpush.msra.mxu0 %v941
      %1137 = vmatpush.msra.mxu0 %v933
      %1138 = vmatmul.f32.gmra.mxu0 %v1060
      %v1139 = vpop.f32.mrf.mxu0
      %v1140 = vadd.f32 0.0, %v1139
      %1141 = vdwg.mxu0
      %1142 = vmatpush.msra.mxu0 %v1054
      %1143 = vmatpush.msra.mxu0 %v1046
      %1144 = vmatpush.msra.mxu0 %v1038
      %1145 = vmatpush.msra.mxu0 %v1030
      %1146 = vmatpush.msra.mxu0 %v1022
      %1147 = vmatpush.msra.mxu0 %v1014
      %1148 = vmatpush.msra.mxu0 %v1006
      %1149 = vmatpush.msra.mxu0 %v998
      %1150 = vmatpush.msra.mxu0 %v990
      %1151 = vmatpush.msra.mxu0 %v982
      %1152 = vmatpush.msra.mxu0 %v974
      %1153 = vmatpush.msra.mxu0 %v966
      %1154 = vmatpush.msra.mxu0 %v958
      %1155 = vmatpush.msra.mxu0 %v950
      %1156 = vmatpush.msra.mxu0 %v942
      %1157 = vmatpush.msra.mxu0 %v934
      %1158 = vmatmul.f32.gmra.mxu0 %v1060
      %v1159 = vpop.f32.mrf.mxu0
      %v1160 = vadd.f32 0.0, %v1159
      %1161 = vdwg.mxu0
      %1162 = vmatpush.msra.mxu0 %v1055
      %1163 = vmatpush.msra.mxu0 %v1047
      %1164 = vmatpush.msra.mxu0 %v1039
      %1165 = vmatpush.msra.mxu0 %v1031
      %1166 = vmatpush.msra.mxu0 %v1023
      %1167 = vmatpush.msra.mxu0 %v1015
      %1168 = vmatpush.msra.mxu0 %v1007
      %1169 = vmatpush.msra.mxu0 %v999
      %1170 = vmatpush.msra.mxu0 %v991
      %1171 = vmatpush.msra.mxu0 %v983
      %1172 = vmatpush.msra.mxu0 %v975
      %1173 = vmatpush.msra.mxu0 %v967
      %1174 = vmatpush.msra.mxu0 %v959
      %1175 = vmatpush.msra.mxu0 %v951
      %1176 = vmatpush.msra.mxu0 %v943
      %1177 = vmatpush.msra.mxu0 %v935
      %1178 = vmatmul.f32.gmra.mxu0 %v1060
      %v1179 = vpop.f32.mrf.mxu0
      %v1180 = vadd.f32 0.0, %v1179
      %1181 = vdwg.mxu0
      %1182 = vmatpush.msra.mxu0 %v1056
      %1183 = vmatpush.msra.mxu0 %v1048
      %1184 = vmatpush.msra.mxu0 %v1040
      %1185 = vmatpush.msra.mxu0 %v1032
      %1186 = vmatpush.msra.mxu0 %v1024
      %1187 = vmatpush.msra.mxu0 %v1016
      %1188 = vmatpush.msra.mxu0 %v1008
      %1189 = vmatpush.msra.mxu0 %v1000
      %1190 = vmatpush.msra.mxu0 %v992
      %1191 = vmatpush.msra.mxu0 %v984
      %1192 = vmatpush.msra.mxu0 %v976
      %1193 = vmatpush.msra.mxu0 %v968
      %1194 = vmatpush.msra.mxu0 %v960
      %1195 = vmatpush.msra.mxu0 %v952
      %1196 = vmatpush.msra.mxu0 %v944
      %1197 = vmatpush.msra.mxu0 %v936
      %1198 = vmatmul.f32.gmra.mxu0 %v1060
      %v1199 = vpop.f32.mrf.mxu0
      %v1200 = vadd.f32 0.0, %v1199
      %1201 = vdwg.mxu0
      %1202 = vmatpush.msra.mxu0 %v1057
      %1203 = vmatpush.msra.mxu0 %v1049
      %1204 = vmatpush.msra.mxu0 %v1041
      %1205 = vmatpush.msra.mxu0 %v1033
      %1206 = vmatpush.msra.mxu0 %v1025
      %1207 = vmatpush.msra.mxu0 %v1017
      %1208 = vmatpush.msra.mxu0 %v1009
      %1209 = vmatpush.msra.mxu0 %v1001
      %1210 = vmatpush.msra.mxu0 %v993
      %1211 = vmatpush.msra.mxu0 %v985
      %1212 = vmatpush.msra.mxu0 %v977
      %1213 = vmatpush.msra.mxu0 %v969
      %1214 = vmatpush.msra.mxu0 %v961
      %1215 = vmatpush.msra.mxu0 %v953
      %1216 = vmatpush.msra.mxu0 %v945
      %1217 = vmatpush.msra.mxu0 %v937
      %1218 = vmatmul.f32.gmra.mxu0 %v1060
      %v1219 = vpop.f32.mrf.mxu0
      %v1220 = vadd.f32 0.0, %v1219
      %1221 = vdwg.mxu0
      %1222 = vmatpush.msra.mxu0 %v657
      %1223 = vmatpush.msra.mxu0 %v649
      %1224 = vmatpush.msra.mxu0 %v641
      %1225 = vmatpush.msra.mxu0 %v633
      %1226 = vmatpush.msra.mxu0 %v625
      %1227 = vmatpush.msra.mxu0 %v617
      %1228 = vmatpush.msra.mxu0 %v609
      %1229 = vmatpush.msra.mxu0 %v601
      %1230 = vmatpush.msra.mxu0 %v593
      %1231 = vmatpush.msra.mxu0 %v585
      %1232 = vmatpush.msra.mxu0 %v577
      %1233 = vmatpush.msra.mxu0 %v569
      %1234 = vmatpush.msra.mxu0 %v561
      %1235 = vmatpush.msra.mxu0 %v553
      %1236 = vmatpush.msra.mxu0 %v545
      %1237 = vmatpush.msra.mxu0 %v537
      %1238 = vmatmul.f32.gmra.mxu0 %v1058
      %v1239 = vpop.f32.mrf.mxu0
      %v1240 = vadd.f32 %v1080, %v1239
      %1241 = vdwg.mxu0
      %1242 = vmatpush.msra.mxu0 %v658
      %1243 = vmatpush.msra.mxu0 %v650
      %1244 = vmatpush.msra.mxu0 %v642
      %1245 = vmatpush.msra.mxu0 %v634
      %1246 = vmatpush.msra.mxu0 %v626
      %1247 = vmatpush.msra.mxu0 %v618
      %1248 = vmatpush.msra.mxu0 %v610
      %1249 = vmatpush.msra.mxu0 %v602
      %1250 = vmatpush.msra.mxu0 %v594
      %1251 = vmatpush.msra.mxu0 %v586
      %1252 = vmatpush.msra.mxu0 %v578
      %1253 = vmatpush.msra.mxu0 %v570
      %1254 = vmatpush.msra.mxu0 %v562
      %1255 = vmatpush.msra.mxu0 %v554
      %1256 = vmatpush.msra.mxu0 %v546
      %1257 = vmatpush.msra.mxu0 %v538
      %1258 = vmatmul.f32.gmra.mxu0 %v1058
      %v1259 = vpop.f32.mrf.mxu0
      %v1260 = vadd.f32 %v1100, %v1259
      %1261 = vdwg.mxu0
      %1262 = vmatpush.msra.mxu0 %v659
      %1263 = vmatpush.msra.mxu0 %v651
      %1264 = vmatpush.msra.mxu0 %v643
      %1265 = vmatpush.msra.mxu0 %v635
      %1266 = vmatpush.msra.mxu0 %v627
      %1267 = vmatpush.msra.mxu0 %v619
      %1268 = vmatpush.msra.mxu0 %v611
      %1269 = vmatpush.msra.mxu0 %v603
      %1270 = vmatpush.msra.mxu0 %v595
      %1271 = vmatpush.msra.mxu0 %v587
      %1272 = vmatpush.msra.mxu0 %v579
      %1273 = vmatpush.msra.mxu0 %v571
      %1274 = vmatpush.msra.mxu0 %v563
      %1275 = vmatpush.msra.mxu0 %v555
      %1276 = vmatpush.msra.mxu0 %v547
      %1277 = vmatpush.msra.mxu0 %v539
      %1278 = vmatmul.f32.gmra.mxu0 %v1058
      %v1279 = vpop.f32.mrf.mxu0
      %v1280 = vadd.f32 %v1120, %v1279
      %1281 = vdwg.mxu0
      %1282 = vmatpush.msra.mxu0 %v660
      %1283 = vmatpush.msra.mxu0 %v652
      %1284 = vmatpush.msra.mxu0 %v644
      %1285 = vmatpush.msra.mxu0 %v636
      %1286 = vmatpush.msra.mxu0 %v628
      %1287 = vmatpush.msra.mxu0 %v620
      %1288 = vmatpush.msra.mxu0 %v612
      %1289 = vmatpush.msra.mxu0 %v604
      %1290 = vmatpush.msra.mxu0 %v596
      %1291 = vmatpush.msra.mxu0 %v588
      %1292 = vmatpush.msra.mxu0 %v580
      %1293 = vmatpush.msra.mxu0 %v572
      %1294 = vmatpush.msra.mxu0 %v564
      %1295 = vmatpush.msra.mxu0 %v556
      %1296 = vmatpush.msra.mxu0 %v548
      %1297 = vmatpush.msra.mxu0 %v540
      %1298 = vmatmul.f32.gmra.mxu0 %v1058
      %v1299 = vpop.f32.mrf.mxu0
      %v1300 = vadd.f32 %v1140, %v1299
      %1301 = vdwg.mxu0
      %1302 = vmatpush.msra.mxu0 %v661
      %1303 = vmatpush.msra.mxu0 %v653
      %1304 = vmatpush.msra.mxu0 %v645
      %1305 = vmatpush.msra.mxu0 %v637
      %1306 = vmatpush.msra.mxu0 %v629
      %1307 = vmatpush.msra.mxu0 %v621
      %1308 = vmatpush.msra.mxu0 %v613
      %1309 = vmatpush.msra.mxu0 %v605
      %1310 = vmatpush.msra.mxu0 %v597
      %1311 = vmatpush.msra.mxu0 %v589
      %1312 = vmatpush.msra.mxu0 %v581
      %1313 = vmatpush.msra.mxu0 %v573
      %1314 = vmatpush.msra.mxu0 %v565
      %1315 = vmatpush.msra.mxu0 %v557
      %1316 = vmatpush.msra.mxu0 %v549
      %1317 = vmatpush.msra.mxu0 %v541
      %1318 = vmatmul.f32.gmra.mxu0 %v1058
      %v1319 = vpop.f32.mrf.mxu0
      %v1320 = vadd.f32 %v1160, %v1319
      %1321 = vdwg.mxu0
      %1322 = vmatpush.msra.mxu0 %v662
      %1323 = vmatpush.msra.mxu0 %v654
      %1324 = vmatpush.msra.mxu0 %v646
      %1325 = vmatpush.msra.mxu0 %v638
      %1326 = vmatpush.msra.mxu0 %v630
      %1327 = vmatpush.msra.mxu0 %v622
      %1328 = vmatpush.msra.mxu0 %v614
      %1329 = vmatpush.msra.mxu0 %v606
      %1330 = vmatpush.msra.mxu0 %v598
      %1331 = vmatpush.msra.mxu0 %v590
      %1332 = vmatpush.msra.mxu0 %v582
      %1333 = vmatpush.msra.mxu0 %v574
      %1334 = vmatpush.msra.mxu0 %v566
      %1335 = vmatpush.msra.mxu0 %v558
      %1336 = vmatpush.msra.mxu0 %v550
      %1337 = vmatpush.msra.mxu0 %v542
      %1338 = vmatmul.f32.gmra.mxu0 %v1058
      %v1339 = vpop.f32.mrf.mxu0
      %v1340 = vadd.f32 %v1180, %v1339
      %1341 = vdwg.mxu0
      %1342 = vmatpush.msra.mxu0 %v663
      %1343 = vmatpush.msra.mxu0 %v655
      %1344 = vmatpush.msra.mxu0 %v647
      %1345 = vmatpush.msra.mxu0 %v639
      %1346 = vmatpush.msra.mxu0 %v631
      %1347 = vmatpush.msra.mxu0 %v623
      %1348 = vmatpush.msra.mxu0 %v615
      %1349 = vmatpush.msra.mxu0 %v607
      %1350 = vmatpush.msra.mxu0 %v599
      %1351 = vmatpush.msra.mxu0 %v591
      %1352 = vmatpush.msra.mxu0 %v583
      %1353 = vmatpush.msra.mxu0 %v575
      %1354 = vmatpush.msra.mxu0 %v567
      %1355 = vmatpush.msra.mxu0 %v559
      %1356 = vmatpush.msra.mxu0 %v551
      %1357 = vmatpush.msra.mxu0 %v543
      %1358 = vmatmul.f32.gmra.mxu0 %v1058
      %v1359 = vpop.f32.mrf.mxu0
      %v1360 = vadd.f32 %v1200, %v1359
      %1361 = vdwg.mxu0
      %1362 = vmatpush.msra.mxu0 %v664
      %1363 = vmatpush.msra.mxu0 %v656
      %1364 = vmatpush.msra.mxu0 %v648
      %1365 = vmatpush.msra.mxu0 %v640
      %1366 = vmatpush.msra.mxu0 %v632
      %1367 = vmatpush.msra.mxu0 %v624
      %1368 = vmatpush.msra.mxu0 %v616
      %1369 = vmatpush.msra.mxu0 %v608
      %1370 = vmatpush.msra.mxu0 %v600
      %1371 = vmatpush.msra.mxu0 %v592
      %1372 = vmatpush.msra.mxu0 %v584
      %1373 = vmatpush.msra.mxu0 %v576
      %1374 = vmatpush.msra.mxu0 %v568
      %1375 = vmatpush.msra.mxu0 %v560
      %1376 = vmatpush.msra.mxu0 %v552
      %1377 = vmatpush.msra.mxu0 %v544
      %1378 = vmatmul.f32.gmra.mxu0 %v1058
      %v1379 = vpop.f32.mrf.mxu0
      %v1380 = vadd.f32 %v1220, %v1379
      %1381 = vdwg.mxu0
      %v1390 = vrot.slane %v1260, 7
      %v1391 = vrot.slane %v1280, 6
      %v1392 = vrot.slane %v1300, 5
      %v1393 = vrot.slane %v1320, 4
      %v1394 = vrot.slane %v1340, 3
      %v1395 = vrot.slane %v1360, 2
      %v1396 = vrot.slane %v1380, 1
      %vm1397 = vcmask 1040384
      %v1398 = vsel %vm1397, %v1240, %v1390
      %vm1399 = vcmask 1042434
      %v1400 = vsel %vm1399, %v1391, %v1392
      %vm1401 = vcmask 1041408
      %v1402 = vsel %vm1401, %v1398, %v1400
      %vm1403 = vcmask 1044484
      %v1404 = vsel %vm1403, %v1393, %v1394
      %vm1405 = vcmask 1046534
      %v1406 = vsel %vm1405, %v1395, %v1396
      %vm1407 = vcmask 1045508
      %v1408 = vsel %vm1407, %v1404, %v1406
      %vm1409 = vcmask 1043456
      %v1410 = vsel %vm1409, %v1402, %v1408
      %1412 = vst [vmem:[%s253] sm:$0xff] %v1410
      %s1413 = smul.u32 8, %s19
      %p1414 = scmp.lt.s32.totalorder %s18, 1
      %s1415 = scalar_select %p1414, %s18, 1
      %p1416 = scmp.lt.s32.totalorder %s1413, 7
      %s1417 = scalar_select %p1416, %s1413, 7
      %s1418 = smul.addr %s1415, 8
      %s1419 = sadd.s32 %s1417, %s1418
      %s1420 = scalar_lea.vmem %s3, %s1419
      // Predicated region
      $region33: #{edge_logits_pallas.3} parent=31 // pred_check
        %p1421 = pneg %p128
      $region34: #{edge_logits_pallas.3} parent=31 // pred_check_branch
        %1423 = sbr.rel (%p1421) target = $region36
      $region35: #{edge_logits_pallas.3} parent=31 // pred_region
        %s1424 = smul.u32 8, %s19
      $region36: #{edge_logits_pallas.3} parent=31 // pred_fallthru
        _
    $region32: #{edge_logits_pallas.3} parent=5 // pred_fallthru
      _
    %p1425 = scmp.le.s32.totalorder 2, %s9
    // Predicated region
    $region37: #{edge_logits_pallas.3} parent=5 // pred_check
      %p1426 = pneg %p1425
    $region38: #{edge_logits_pallas.3} parent=5 // pred_check_branch
      %1428 = sbr.rel (%p1426) target = $region40
    $region39: #{edge_logits_pallas.3} parent=5 // pred_region
      %s1429 = ssub.s32 %s9, 2
      // Predicated region
      $region41: #{edge_logits_pallas.3} parent=39 // pred_check
        %p1430 = pneg %p134
      $region42: #{edge_logits_pallas.3} parent=39 // pred_check_branch
        %1432 = sbr.rel (%p1430) target = $region44
      $region43: #{edge_logits_pallas.3} parent=39 // pred_region
        %s1433 = smul.u32 8, %s21
        %p1434 = scmp.lt.s32.totalorder %s20, 1
        %s1435 = scalar_select %p1434, %s20, 1
        %p1436 = scmp.lt.s32.totalorder %s1433, 7
        %s1437 = scalar_select %p1436, %s1433, 7
        %s1438 = smul.addr %s1435, 8
        %s1439 = sadd.s32 %s1437, %s1438
        %s1440 = scalar_lea.vmem %s3, %s1439
      $region44: #{edge_logits_pallas.3} parent=39 // pred_fallthru
        _
    $region40: #{edge_logits_pallas.3} parent=5 // pred_fallthru
      _
  $region6: #{edge_logits_pallas.3} parent=0 // loop_footer
    %s13 = sadd.s32 1, %s9
  $region7: #{edge_logits_pallas.3} parent=0 // loop_footer_branch
    %8 = sbr.rel target = $region3
  $region8: #{edge_logits_pallas.3} parent=0 // loop_exit
    _

</llo_original>
